<compile_context>
chip_gen: v6e
topology: v6e:2x2x1
jax: 0.10.0
libtpu: 0.0.40
codegen_flags: <defaults>
</compile_context>

<pallas_src>
import functools
import math

import jax
import jax.numpy as jnp
import numpy as np
from jax import lax
from jax.experimental import pallas as pl
from jax.experimental.pallas import tpu as pltpu

_LANE = 128
_SUBLANE = 8


def _round_up(n, m):
    return ((n + m - 1) // m) * m


def _pad2(a, rows, cols):
    r, c = a.shape
    return jnp.pad(a, ((0, rows - r), (0, cols - c)))


def _vmem_limit_bytes():
    """Generation-aware VMEM cap: ~3/4 of per-core VMEM (v7x ~48 MiB, v5e/v6e ~96 MiB)."""
    cap = None
    try:
        cap = getattr(pltpu.get_tpu_info(), "vmem_capacity_bytes", None)
    except Exception:
        cap = None
    if not cap:
        cap = 64 * 1024 * 1024  # conservative default (v7x per-TensorCore VMEM)
    return min(int(cap) * 3 // 4, 112 * 1024 * 1024)


# ---------------------------------------------------------------------------
# Fused kernel: at grid step 0, compute K and W_0(V) for the whole (padded)
# sequence into VMEM scratch; every step handles one query-row tile
# (Q projection -> scores -> softmax -> attention residual -> FFN residual).
# ---------------------------------------------------------------------------
def _fused_layer_kernel(x_ref, wq_ref, bq_ref, wkv_ref, bkv_ref, w0_ref, b0_ref,
                        wl_ref, bl_ref, wf_ref, bf_ref, mask_ref,
                        s_ref, y_ref, k_sc, v0_sc, *,
                        tq, d_int_pad, apply_mask, approx_recip):
    i = pl.program_id(0)
    cdt = wq_ref.dtype                      # compute dtype: f32, or bf16 in perf mode

    # ---- one-time: K and W_0(V) for the whole padded sequence (compute dtype) ----
    @pl.when(i == 0)
    def _():
        x_all = x_ref[...].astype(cdt)
        kv = jnp.dot(x_all, wkv_ref[...], preferred_element_type=jnp.float32) + bkv_ref[...]
        k = kv[:, :d_int_pad]
        v = kv[:, d_int_pad:]
        v0 = jnp.dot(v.astype(cdt), w0_ref[...],
                     preferred_element_type=jnp.float32) + b0_ref[...]
        k_sc[...] = k.astype(k_sc.dtype)
        v0_sc[...] = v0.astype(v0_sc.dtype)

    # ---- per query-row tile ----
    row0 = pl.multiple_of(i * tq, tq)
    x_tile = x_ref[pl.ds(row0, tq), :]       # [tq, dm_p] f32, sliced from resident x

    # 1/sqrt(d_internal) already folded into wq / bq at trace time.
    q = jnp.dot(x_tile.astype(cdt), wq_ref[...],
                preferred_element_type=jnp.float32) + bq_ref[...]

    # scores[i, j] = q[i] . k[j]  (contract last dims -> no materialized k.T / XLU transpose)
    scores = lax.dot_general(q.astype(cdt), k_sc[...], (((1,), (1,)), ((), ())),
                             preferred_element_type=jnp.float32)
    if apply_mask:
        scores = scores + mask_ref[...]      # 0 on real keys, -1e30 on zero-padded key rows

    m = jnp.max(scores, axis=-1, keepdims=True)
    e = jnp.exp(scores - m)
    denom = jnp.sum(e, axis=-1, keepdims=True)
    if approx_recip:
        s = e * pl.reciprocal(denom, approx=True)   # EUP reciprocal (bf16 perf path)
    else:
        s = e / denom                               # exact division (module semantics)

    z = jnp.dot(s.astype(cdt), v0_sc[...], preferred_element_type=jnp.float32)
    attention = x_tile + z                          # residual (f32)

    h = jnp.dot(attention.astype(cdt), wl_ref[...],
                preferred_element_type=jnp.float32) + bl_ref[...]
    h = jnp.maximum(h, 0.0)
    ff = jnp.dot(h.astype(cdt), wf_ref[...],
                 preferred_element_type=jnp.float32) + bf_ref[...]

    s_ref[...] = s
    y_ref[...] = ff + attention


def transformer_layer(x, params, d_internal, *, tq=256, use_bf16=False,
                      single_buffer_resident=True):
    """x: [T, d_model] f32.  params: dict of [in, out] weights and [1, out] biases.

    Returns (S, Y): S [T, T] attention map, Y [T, d_model], matching TransformerLayer.forward.
    """
    T, d_model = x.shape
    d_ff = params["wl"].shape[1]

    dm_p = _round_up(d_model, _LANE)
    di_p = _round_up(d_internal, _LANE)
    dff_p = _round_up(d_ff, _LANE)

    # tq multiple of 16 in bf16 mode (2 rows / sublane packing), 8 otherwise; clamp to T.
    align = 16 if use_bf16 else _SUBLANE
    tq = _round_up(min(tq, _round_up(T, align)), align)
    t_p = _round_up(T, tq)
    n_tiles = t_p // tq
    apply_mask = t_p != T

    w_dt = jnp.bfloat16 if use_bf16 else jnp.float32
    inv_scale = 1.0 / math.sqrt(float(d_internal))

    x_p = _pad2(x, t_p, dm_p)
    # Q projection with the softmax scale folded in at trace time (exact: c*(xW+b) = x(cW)+cb).
    wq = (_pad2(params["wq"], dm_p, di_p) * inv_scale).astype(w_dt)
    bq = _pad2(params["bq"], 1, di_p) * inv_scale
    # Fused K|V projection.
    wkv = jnp.concatenate([_pad2(params["wk"], dm_p, di_p),
                           _pad2(params["wv"], dm_p, di_p)], axis=1).astype(w_dt)
    bkv = jnp.concatenate([_pad2(params["bk"], 1, di_p),
                           _pad2(params["bv"], 1, di_p)], axis=1)
    w0 = _pad2(params["w0"], di_p, dm_p).astype(w_dt)
    b0 = _pad2(params["b0"], 1, dm_p)
    wl = _pad2(params["wl"], dm_p, dff_p).astype(w_dt)
    bl = _pad2(params["bl"], 1, dff_p)
    wf = _pad2(params["wf"], dff_p, dm_p).astype(w_dt)
    bf = _pad2(params["bf"], 1, dm_p)

    # Additive key-padding mask row (resident): 0 for real keys, -1e30 for padded key rows.
    col = jnp.arange(t_p, dtype=jnp.int32)[None, :]
    mask = jnp.where(col < T, 0.0, -1e30).astype(jnp.float32)

    single_buffer = single_buffer_resident and hasattr(pl, "Buffered")

    def resident(shape):
        # Operands with constant index_maps never re-DMA; single-buffer them when supported.
        if single_buffer:
            try:
                return pl.BlockSpec(shape, lambda i: (0, 0), pipeline_mode=pl.Buffered(1))
            except TypeError:
                pass
        return pl.BlockSpec(shape, lambda i: (0, 0))

    kernel = functools.partial(
        _fused_layer_kernel,
        tq=tq, d_int_pad=di_p, apply_mask=apply_mask, approx_recip=use_bf16,
    )

    s_p, y_p = pl.pallas_call(
        kernel,
        out_shape=(
            jax.ShapeDtypeStruct((t_p, t_p), jnp.float32),    # S (attention map)
            jax.ShapeDtypeStruct((t_p, dm_p), jnp.float32),   # layer output
        ),
        grid_spec=pltpu.PrefetchScalarGridSpec(
            num_scalar_prefetch=0,
            grid=(n_tiles,),
            in_specs=[
                resident((t_p, dm_p)),        # x (full, resident)
                resident((dm_p, di_p)),       # Wq (pre-scaled)
                resident((1, di_p)),          # bq (pre-scaled)
                resident((dm_p, 2 * di_p)),   # fused Wk|Wv
                resident((1, 2 * di_p)),      # bk|bv
                resident((di_p, dm_p)),       # W0
                resident((1, dm_p)),          # b0
                resident((dm_p, dff_p)),      # lin weight
                resident((1, dff_p)),         # lin bias
                resident((dff_p, dm_p)),      # W weight
                resident((1, dm_p)),          # W bias
                resident((1, t_p)),           # key-padding mask row
            ],
            out_specs=(
                pl.BlockSpec((tq, t_p), lambda i: (i, 0)),
                pl.BlockSpec((tq, dm_p), lambda i: (i, 0)),
            ),
            scratch_shapes=[
                pltpu.VMEM((t_p, di_p), w_dt),   # K scratch (compute dtype, single copy)
                pltpu.VMEM((t_p, dm_p), w_dt),   # W_0(V) scratch (compute dtype, single copy)
            ],
        ),
        compiler_params=pltpu.CompilerParams(
            # "arbitrary": K/V0 scratch is initialized at step 0 and reused by later steps,
            # so this axis must stay on one core (see TODO for v7x core-parallel variant).
            dimension_semantics=("arbitrary",),
            vmem_limit_bytes=_vmem_limit_bytes(),
        ),
    )(x_p, wq, bq, wkv, bkv, w0, b0, wl, bl, wf, bf, mask)

    return s_p[:T, :T], y_p[:T, :d_model]


def make_params(key, d_model, d_internal, d_ff):
    """Deterministic synthetic parameters (shapes match the nn.Module, pre-transposed to [in,out])."""
    ks = jax.random.split(key, 12)

    def uniform(k, shape, bound):
        return jax.random.uniform(k, shape, jnp.float32, -bound, bound)

    def xavier(k, fan_in, fan_out):
        bound = np.sqrt(6.0 / (fan_in + fan_out))
        return uniform(k, (fan_in, fan_out), bound)

    def default_lin(kw, kb, fan_in, fan_out):
        bound = 1.0 / np.sqrt(fan_in)
        return uniform(kw, (fan_in, fan_out), bound), uniform(kb, (1, fan_out), bound)

    wq, bq = default_lin(ks[0], ks[1], d_model, d_internal)
    wk, bk = default_lin(ks[2], ks[3], d_model, d_internal)
    wv = xavier(ks[4], d_model, d_internal)                     # nn.init.xavier_uniform_(V.weight)
    bv = uniform(ks[5], (1, d_internal), 1.0 / np.sqrt(d_model))
    w0, b0 = default_lin(ks[6], ks[7], d_internal, d_model)
    wl, bl = default_lin(ks[8], ks[9], d_model, d_ff)
    wf = xavier(ks[10], d_ff, d_model)                          # nn.init.xavier_uniform_(W.weight)
    bf = uniform(ks[11], (1, d_model), 1.0 / np.sqrt(d_ff))

    return dict(wq=wq, bq=bq, wk=wk, bk=bk, wv=wv, bv=bv,
                w0=w0, b0=b0, wl=wl, bl=bl, wf=wf, bf=bf)


def reference(x, p, d_internal):
    """Pure-JAX reference mirroring the PyTorch forward."""
    q = x @ p["wq"] + p["bq"]
    k = x @ p["wk"] + p["bk"]
    v = x @ p["wv"] + p["bv"]
    s = jax.nn.softmax((q @ k.T) / np.sqrt(float(d_internal)), axis=1)
    v0 = v @ p["w0"] + p["b0"]
    attn = x + s @ v0
    ff = jnp.maximum(attn @ p["wl"] + p["bl"], 0.0) @ p["wf"] + p["bf"]
    return s, ff + attn


if __name__ == "__main__":
    # Small shapes implied by the module; T deliberately not lane/sublane aligned so both the
    # unmasked single-tile path and the padded / multi-tile masked path are exercised.
    T, D_MODEL, D_INTERNAL, D_FF = 40, 32, 16, 100

    key = jax.random.PRNGKey(0)
    kx, kp = jax.random.split(key)
    x = jax.random.normal(kx, (T, D_MODEL), jnp.float32)
    params = make_params(kp, D_MODEL, D_INTERNAL, D_FF)

    s_ref, y_ref = reference(x, params, D_INTERNAL)

    def run_checks(single_buffer):
        # f32, default tq (clamps to one tile) -- exact module semantics, exact softmax divide.
        fwd = jax.jit(functools.partial(transformer_layer, d_internal=D_INTERNAL,
                                        use_bf16=False,
                                        single_buffer_resident=single_buffer))
        s, y = fwd(x, params)
        jax.block_until_ready((s, y))
        np.testing.assert_allclose(np.asarray(s), np.asarray(s_ref), rtol=2e-3, atol=2e-3)
        np.testing.assert_allclose(np.asarray(y), np.asarray(y_ref), rtol=2e-3, atol=2e-3)

        # f32, small tq -> multi-tile grid, scratch reuse across steps, key-padding mask path.
        fwd_tiled = jax.jit(functools.partial(transformer_layer, d_internal=D_INTERNAL,
                                              tq=16, use_bf16=False,
                                              single_buffer_resident=single_buffer))
        s3, y3 = fwd_tiled(x, params)
        jax.block_until_ready((s3, y3))
        np.testing.assert_allclose(np.asarray(s3), np.asarray(s_ref), rtol=2e-3, atol=2e-3)
        np.testing.assert_allclose(np.asarray(y3), np.asarray(y_ref), rtol=2e-3, atol=2e-3)

        # bf16-matmul perf path (f32 accumulation / softmax / residual elementwise).
        fwd_bf16 = jax.jit(functools.partial(transformer_layer, d_internal=D_INTERNAL,
                                             use_bf16=True,
                                             single_buffer_resident=single_buffer))
        s2, y2 = fwd_bf16(x, params)
        jax.block_until_ready((s2, y2))
        np.testing.assert_allclose(np.asarray(s2), np.asarray(s_ref), rtol=5e-2, atol=5e-2)
        np.testing.assert_allclose(np.asarray(y2), np.asarray(y_ref), rtol=5e-2, atol=5e-2)

    try:
        run_checks(single_buffer=True)
    except Exception:
        # pipeline_mode=pl.Buffered(1) not supported by this Pallas build -> default buffering.
        run_checks(single_buffer=False)

    print("KERNEL_OK")
</pallas_src>

<mosaic_0001>
module attributes {stable_mosaic.version = 11 : i64} {
  func.func @_fused_layer_kernel(%arg0: i32, %arg1: memref<40x128xf32, #tpu.memory_space<vmem>>, %arg2: memref<128x128xf32, #tpu.memory_space<vmem>>, %arg3: memref<1x128xf32, #tpu.memory_space<vmem>>, %arg4: memref<128x256xf32, #tpu.memory_space<vmem>>, %arg5: memref<1x256xf32, #tpu.memory_space<vmem>>, %arg6: memref<128x128xf32, #tpu.memory_space<vmem>>, %arg7: memref<1x128xf32, #tpu.memory_space<vmem>>, %arg8: memref<128x128xf32, #tpu.memory_space<vmem>>, %arg9: memref<1x128xf32, #tpu.memory_space<vmem>>, %arg10: memref<128x128xf32, #tpu.memory_space<vmem>>, %arg11: memref<1x128xf32, #tpu.memory_space<vmem>>, %arg12: memref<1x40xf32, #tpu.memory_space<vmem>>, %arg13: memref<40x40xf32, #tpu.memory_space<vmem>>, %arg14: memref<40x128xf32, #tpu.memory_space<vmem>>, %arg15: memref<40x128xf32, #tpu.memory_space<vmem>>, %arg16: memref<40x128xf32, #tpu.memory_space<vmem>>) attributes {dimension_semantics = [#tpu.dimension_semantics<arbitrary>], iteration_bounds = array<i64: 1>, scalar_prefetch = 0 : i64, scratch_operands = 2 : i64, tpu.core_type = #tpu.core_type<tc>, window_params = [{pipeline_mode = #tpu.pipeline_mode<synchronous>, transform_indices = @transform_0, window_bounds = array<i64: 40, 128>}, {pipeline_mode = #tpu.pipeline_mode<synchronous>, transform_indices = @transform_1, window_bounds = array<i64: 128, 128>}, {pipeline_mode = #tpu.pipeline_mode<synchronous>, transform_indices = @transform_2, window_bounds = array<i64: 1, 128>}, {pipeline_mode = #tpu.pipeline_mode<synchronous>, transform_indices = @transform_3, window_bounds = array<i64: 128, 256>}, {pipeline_mode = #tpu.pipeline_mode<synchronous>, transform_indices = @transform_4, window_bounds = array<i64: 1, 256>}, {pipeline_mode = #tpu.pipeline_mode<synchronous>, transform_indices = @transform_5, window_bounds = array<i64: 128, 128>}, {pipeline_mode = #tpu.pipeline_mode<synchronous>, transform_indices = @transform_6, window_bounds = array<i64: 1, 128>}, {pipeline_mode = #tpu.pipeline_mode<synchronous>, transform_indices = @transform_7, window_bounds = array<i64: 128, 128>}, {pipeline_mode = #tpu.pipeline_mode<synchronous>, transform_indices = @transform_8, window_bounds = array<i64: 1, 128>}, {pipeline_mode = #tpu.pipeline_mode<synchronous>, transform_indices = @transform_9, window_bounds = array<i64: 128, 128>}, {pipeline_mode = #tpu.pipeline_mode<synchronous>, transform_indices = @transform_10, window_bounds = array<i64: 1, 128>}, {pipeline_mode = #tpu.pipeline_mode<synchronous>, transform_indices = @transform_11, window_bounds = array<i64: 1, 40>}, {transform_indices = @transform_12, window_bounds = array<i64: 40, 40>}, {transform_indices = @transform_13, window_bounds = array<i64: 40, 128>}]} {
    %c0_i32 = arith.constant 0 : i32
    %0 = arith.cmpi eq, %arg0, %c0_i32 : i32
    %1 = arith.extui %0 : i1 to i32
    %c0_i32_0 = arith.constant 0 : i32
    %2 = arith.cmpi ne, %1, %c0_i32_0 : i32
    scf.if %2 {
      %c0_28 = arith.constant 0 : index
      %c0_29 = arith.constant 0 : index
      %41 = vector.load %arg1[%c0_28, %c0_29] : memref<40x128xf32, #tpu.memory_space<vmem>>, vector<40x128xf32>
      %c0_30 = arith.constant 0 : index
      %c0_31 = arith.constant 0 : index
      %42 = vector.load %arg4[%c0_30, %c0_31] : memref<128x256xf32, #tpu.memory_space<vmem>>, vector<128x256xf32>
      %cst_32 = arith.constant dense<0.000000e+00> : vector<40x256xf32>
      %43 = tpu.matmul %41, %42, %cst_32 {dimension_numbers = #tpu.dot_dimension_numbers<[1], [0], [0], [1], [0, 0, 1, 1], [], []>} : vector<40x128xf32>, vector<128x256xf32>, vector<40x256xf32> -> vector<40x256xf32>
      %c0_33 = arith.constant 0 : index
      %c0_34 = arith.constant 0 : index
      %44 = vector.load %arg5[%c0_33, %c0_34] : memref<1x256xf32, #tpu.memory_space<vmem>>, vector<1x256xf32>
      %45 = vector.broadcast %44 : vector<1x256xf32> to vector<40x256xf32>
      %46 = arith.addf %43, %45 : vector<40x256xf32>
      %47 = vector.extract_strided_slice %46 {offsets = [0, 0], sizes = [40, 128], strides = [1, 1]} : vector<40x256xf32> to vector<40x128xf32>
      %48 = vector.extract_strided_slice %46 {offsets = [0, 128], sizes = [40, 128], strides = [1, 1]} : vector<40x256xf32> to vector<40x128xf32>
      %c0_35 = arith.constant 0 : index
      %c0_36 = arith.constant 0 : index
      %49 = vector.load %arg6[%c0_35, %c0_36] : memref<128x128xf32, #tpu.memory_space<vmem>>, vector<128x128xf32>
      %cst_37 = arith.constant dense<0.000000e+00> : vector<40x128xf32>
      %50 = tpu.matmul %48, %49, %cst_37 {dimension_numbers = #tpu.dot_dimension_numbers<[1], [0], [0], [1], [0, 0, 1, 1], [], []>} : vector<40x128xf32>, vector<128x128xf32>, vector<40x128xf32> -> vector<40x128xf32>
      %c0_38 = arith.constant 0 : index
      %c0_39 = arith.constant 0 : index
      %51 = vector.load %arg7[%c0_38, %c0_39] : memref<1x128xf32, #tpu.memory_space<vmem>>, vector<1x128xf32>
      %52 = vector.broadcast %51 : vector<1x128xf32> to vector<40x128xf32>
      %53 = arith.addf %50, %52 : vector<40x128xf32>
      %c0_40 = arith.constant 0 : index
      %c0_41 = arith.constant 0 : index
      %54 = vector.load %arg15[%c0_40, %c0_41] : memref<40x128xf32, #tpu.memory_space<vmem>>, vector<40x128xf32>
      tpu.vector_store %arg15[%c0_40, %c0_41], %47 {strides = array<i32>} : memref<40x128xf32, #tpu.memory_space<vmem>>, vector<40x128xf32>,
      %c0_42 = arith.constant 0 : index
      %c0_43 = arith.constant 0 : index
      %55 = vector.load %arg16[%c0_42, %c0_43] : memref<40x128xf32, #tpu.memory_space<vmem>>, vector<40x128xf32>
      tpu.vector_store %arg16[%c0_42, %c0_43], %53 {strides = array<i32>} : memref<40x128xf32, #tpu.memory_space<vmem>>, vector<40x128xf32>,
    } else {
    }
    %c40_i32 = arith.constant 40 : i32
    %3 = arith.muli %arg0, %c40_i32 : i32
    %4 = tpu.assume_multiple %3, 40 : i32
    %5 = arith.index_cast %4 : i32 to index
    %c0 = arith.constant 0 : index
    %6 = vector.load %arg1[%5, %c0] : memref<40x128xf32, #tpu.memory_space<vmem>>, vector<40x128xf32>
    %c0_1 = arith.constant 0 : index
    %c0_2 = arith.constant 0 : index
    %7 = vector.load %arg2[%c0_1, %c0_2] : memref<128x128xf32, #tpu.memory_space<vmem>>, vector<128x128xf32>
    %cst = arith.constant dense<0.000000e+00> : vector<40x128xf32>
    %8 = tpu.matmul %6, %7, %cst {dimension_numbers = #tpu.dot_dimension_numbers<[1], [0], [0], [1], [0, 0, 1, 1], [], []>} : vector<40x128xf32>, vector<128x128xf32>, vector<40x128xf32> -> vector<40x128xf32>
    %c0_3 = arith.constant 0 : index
    %c0_4 = arith.constant 0 : index
    %9 = vector.load %arg3[%c0_3, %c0_4] : memref<1x128xf32, #tpu.memory_space<vmem>>, vector<1x128xf32>
    %10 = vector.broadcast %9 : vector<1x128xf32> to vector<40x128xf32>
    %11 = arith.addf %8, %10 : vector<40x128xf32>
    %c0_5 = arith.constant 0 : index
    %c0_6 = arith.constant 0 : index
    %12 = vector.load %arg15[%c0_5, %c0_6] : memref<40x128xf32, #tpu.memory_space<vmem>>, vector<40x128xf32>
    %cst_7 = arith.constant dense<0.000000e+00> : vector<40x40xf32>
    %13 = tpu.matmul %11, %12, %cst_7 {dimension_numbers = #tpu.dot_dimension_numbers<[1], [1], [0], [0], [0, 0, 1, 0], [], []>} : vector<40x128xf32>, vector<40x128xf32>, vector<40x40xf32> -> vector<40x40xf32>
    %cst_8 = arith.constant dense<0xFF800000> : vector<40xf32>
    %14 = vector.multi_reduction <maximumf>, %13, %cst_8 [1] : vector<40x40xf32> to vector<40xf32>
    %15 = vector.shape_cast %14 : vector<40xf32> to vector<40x1xf32>
    %16 = vector.broadcast %15 : vector<40x1xf32> to vector<40x40xf32>
    %17 = arith.subf %13, %16 : vector<40x40xf32>
    %18 = math.exp %17 : vector<40x40xf32>
    %cst_9 = arith.constant dense<0.000000e+00> : vector<40xf32>
    %19 = vector.multi_reduction <add>, %18, %cst_9 [1] : vector<40x40xf32> to vector<40xf32>
    %20 = vector.shape_cast %19 : vector<40xf32> to vector<40x1xf32>
    %21 = vector.broadcast %20 : vector<40x1xf32> to vector<40x40xf32>
    %22 = arith.divf %18, %21 : vector<40x40xf32>
    %c0_10 = arith.constant 0 : index
    %c0_11 = arith.constant 0 : index
    %23 = vector.load %arg16[%c0_10, %c0_11] : memref<40x128xf32, #tpu.memory_space<vmem>>, vector<40x128xf32>
    %cst_12 = arith.constant dense<0.000000e+00> : vector<40x128xf32>
    %24 = tpu.matmul %22, %23, %cst_12 {dimension_numbers = #tpu.dot_dimension_numbers<[1], [0], [0], [1], [0, 0, 1, 1], [], []>} : vector<40x40xf32>, vector<40x128xf32>, vector<40x128xf32> -> vector<40x128xf32>
    %25 = arith.addf %6, %24 : vector<40x128xf32>
    %c0_13 = arith.constant 0 : index
    %c0_14 = arith.constant 0 : index
    %26 = vector.load %arg8[%c0_13, %c0_14] : memref<128x128xf32, #tpu.memory_space<vmem>>, vector<128x128xf32>
    %cst_15 = arith.constant dense<0.000000e+00> : vector<40x128xf32>
    %27 = tpu.matmul %25, %26, %cst_15 {dimension_numbers = #tpu.dot_dimension_numbers<[1], [0], [0], [1], [0, 0, 1, 1], [], []>} : vector<40x128xf32>, vector<128x128xf32>, vector<40x128xf32> -> vector<40x128xf32>
    %c0_16 = arith.constant 0 : index
    %c0_17 = arith.constant 0 : index
    %28 = vector.load %arg9[%c0_16, %c0_17] : memref<1x128xf32, #tpu.memory_space<vmem>>, vector<1x128xf32>
    %29 = vector.broadcast %28 : vector<1x128xf32> to vector<40x128xf32>
    %30 = arith.addf %27, %29 : vector<40x128xf32>
    %cst_18 = arith.constant 0.000000e+00 : f32
    %31 = vector.broadcast %cst_18 : f32 to vector<40x128xf32>
    %32 = arith.maximumf %30, %31 : vector<40x128xf32>
    %c0_19 = arith.constant 0 : index
    %c0_20 = arith.constant 0 : index
    %33 = vector.load %arg10[%c0_19, %c0_20] : memref<128x128xf32, #tpu.memory_space<vmem>>, vector<128x128xf32>
    %cst_21 = arith.constant dense<0.000000e+00> : vector<40x128xf32>
    %34 = tpu.matmul %32, %33, %cst_21 {dimension_numbers = #tpu.dot_dimension_numbers<[1], [0], [0], [1], [0, 0, 1, 1], [], []>} : vector<40x128xf32>, vector<128x128xf32>, vector<40x128xf32> -> vector<40x128xf32>
    %c0_22 = arith.constant 0 : index
    %c0_23 = arith.constant 0 : index
    %35 = vector.load %arg11[%c0_22, %c0_23] : memref<1x128xf32, #tpu.memory_space<vmem>>, vector<1x128xf32>
    %36 = vector.broadcast %35 : vector<1x128xf32> to vector<40x128xf32>
    %37 = arith.addf %34, %36 : vector<40x128xf32>
    %c0_24 = arith.constant 0 : index
    %c0_25 = arith.constant 0 : index
    %38 = vector.load %arg13[%c0_24, %c0_25] : memref<40x40xf32, #tpu.memory_space<vmem>>, vector<40x40xf32>
    tpu.vector_store %arg13[%c0_24, %c0_25], %22 {strides = array<i32>} : memref<40x40xf32, #tpu.memory_space<vmem>>, vector<40x40xf32>,
    %39 = arith.addf %37, %25 : vector<40x128xf32>
    %c0_26 = arith.constant 0 : index
    %c0_27 = arith.constant 0 : index
    %40 = vector.load %arg14[%c0_26, %c0_27] : memref<40x128xf32, #tpu.memory_space<vmem>>, vector<40x128xf32>
    tpu.vector_store %arg14[%c0_26, %c0_27], %39 {strides = array<i32>} : memref<40x128xf32, #tpu.memory_space<vmem>>, vector<40x128xf32>,
    return
  }
  func.func @transform_0(%arg0: i32) -> (i32, i32) {
    %c0_i32 = arith.constant 0 : i32
    %c0_i32_0 = arith.constant 0 : i32
    %c0_i32_1 = arith.constant 0 : i32
    return %c0_i32, %c0_i32_0 : i32, i32
  }
  func.func @transform_1(%arg0: i32) -> (i32, i32) {
    %c0_i32 = arith.constant 0 : i32
    %c0_i32_0 = arith.constant 0 : i32
    %c0_i32_1 = arith.constant 0 : i32
    return %c0_i32, %c0_i32_0 : i32, i32
  }
  func.func @transform_2(%arg0: i32) -> (i32, i32) {
    %c0_i32 = arith.constant 0 : i32
    %c0_i32_0 = arith.constant 0 : i32
    %c0_i32_1 = arith.constant 0 : i32
    return %c0_i32, %c0_i32_0 : i32, i32
  }
  func.func @transform_3(%arg0: i32) -> (i32, i32) {
    %c0_i32 = arith.constant 0 : i32
    %c0_i32_0 = arith.constant 0 : i32
    %c0_i32_1 = arith.constant 0 : i32
    return %c0_i32, %c0_i32_0 : i32, i32
  }
  func.func @transform_4(%arg0: i32) -> (i32, i32) {
    %c0_i32 = arith.constant 0 : i32
    %c0_i32_0 = arith.constant 0 : i32
    %c0_i32_1 = arith.constant 0 : i32
    return %c0_i32, %c0_i32_0 : i32, i32
  }
  func.func @transform_5(%arg0: i32) -> (i32, i32) {
    %c0_i32 = arith.constant 0 : i32
    %c0_i32_0 = arith.constant 0 : i32
    %c0_i32_1 = arith.constant 0 : i32
    return %c0_i32, %c0_i32_0 : i32, i32
  }
  func.func @transform_6(%arg0: i32) -> (i32, i32) {
    %c0_i32 = arith.constant 0 : i32
    %c0_i32_0 = arith.constant 0 : i32
    %c0_i32_1 = arith.constant 0 : i32
    return %c0_i32, %c0_i32_0 : i32, i32
  }
  func.func @transform_7(%arg0: i32) -> (i32, i32) {
    %c0_i32 = arith.constant 0 : i32
    %c0_i32_0 = arith.constant 0 : i32
    %c0_i32_1 = arith.constant 0 : i32
    return %c0_i32, %c0_i32_0 : i32, i32
  }
  func.func @transform_8(%arg0: i32) -> (i32, i32) {
    %c0_i32 = arith.constant 0 : i32
    %c0_i32_0 = arith.constant 0 : i32
    %c0_i32_1 = arith.constant 0 : i32
    return %c0_i32, %c0_i32_0 : i32, i32
  }
  func.func @transform_9(%arg0: i32) -> (i32, i32) {
    %c0_i32 = arith.constant 0 : i32
    %c0_i32_0 = arith.constant 0 : i32
    %c0_i32_1 = arith.constant 0 : i32
    return %c0_i32, %c0_i32_0 : i32, i32
  }
  func.func @transform_10(%arg0: i32) -> (i32, i32) {
    %c0_i32 = arith.constant 0 : i32
    %c0_i32_0 = arith.constant 0 : i32
    %c0_i32_1 = arith.constant 0 : i32
    return %c0_i32, %c0_i32_0 : i32, i32
  }
  func.func @transform_11(%arg0: i32) -> (i32, i32) {
    %c0_i32 = arith.constant 0 : i32
    %c0_i32_0 = arith.constant 0 : i32
    %c0_i32_1 = arith.constant 0 : i32
    return %c0_i32, %c0_i32_0 : i32, i32
  }
  func.func @transform_12(%arg0: i32) -> (i32, i32) {
    %c0_i32 = arith.constant 0 : i32
    %c0_i32_0 = arith.constant 0 : i32
    return %arg0, %c0_i32 : i32, i32
  }
  func.func @transform_13(%arg0: i32) -> (i32, i32) {
    %c0_i32 = arith.constant 0 : i32
    %c0_i32_0 = arith.constant 0 : i32
    return %arg0, %c0_i32 : i32, i32
  }
}

module attributes {stable_mosaic.version = 11 : i64} {
  func.func @_fused_layer_kernel(%arg0: i32, %arg1: memref<40x128xf32, #tpu.memory_space<vmem>>, %arg2: memref<128x128xf32, #tpu.memory_space<vmem>>, %arg3: memref<1x128xf32, #tpu.memory_space<vmem>>, %arg4: memref<128x256xf32, #tpu.memory_space<vmem>>, %arg5: memref<1x256xf32, #tpu.memory_space<vmem>>, %arg6: memref<128x128xf32, #tpu.memory_space<vmem>>, %arg7: memref<1x128xf32, #tpu.memory_space<vmem>>, %arg8: memref<128x128xf32, #tpu.memory_space<vmem>>, %arg9: memref<1x128xf32, #tpu.memory_space<vmem>>, %arg10: memref<128x128xf32, #tpu.memory_space<vmem>>, %arg11: memref<1x128xf32, #tpu.memory_space<vmem>>, %arg12: memref<1x40xf32, #tpu.memory_space<vmem>>, %arg13: memref<40x40xf32, #tpu.memory_space<vmem>>, %arg14: memref<40x128xf32, #tpu.memory_space<vmem>>, %arg15: memref<40x128xf32, #tpu.memory_space<vmem>>, %arg16: memref<40x128xf32, #tpu.memory_space<vmem>>) attributes {dimension_semantics = [#tpu.dimension_semantics<arbitrary>], iteration_bounds = array<i64: 1>, scalar_prefetch = 0 : i64, scratch_operands = 2 : i64, tpu.core_type = #tpu.core_type<tc>, window_params = [{pipeline_mode = #tpu.pipeline_mode<synchronous>, transform_indices = @transform_0, window_bounds = array<i64: 40, 128>}, {pipeline_mode = #tpu.pipeline_mode<synchronous>, transform_indices = @transform_1, window_bounds = array<i64: 128, 128>}, {pipeline_mode = #tpu.pipeline_mode<synchronous>, transform_indices = @transform_2, window_bounds = array<i64: 1, 128>}, {pipeline_mode = #tpu.pipeline_mode<synchronous>, transform_indices = @transform_3, window_bounds = array<i64: 128, 256>}, {pipeline_mode = #tpu.pipeline_mode<synchronous>, transform_indices = @transform_4, window_bounds = array<i64: 1, 256>}, {pipeline_mode = #tpu.pipeline_mode<synchronous>, transform_indices = @transform_5, window_bounds = array<i64: 128, 128>}, {pipeline_mode = #tpu.pipeline_mode<synchronous>, transform_indices = @transform_6, window_bounds = array<i64: 1, 128>}, {pipeline_mode = #tpu.pipeline_mode<synchronous>, transform_indices = @transform_7, window_bounds = array<i64: 128, 128>}, {pipeline_mode = #tpu.pipeline_mode<synchronous>, transform_indices = @transform_8, window_bounds = array<i64: 1, 128>}, {pipeline_mode = #tpu.pipeline_mode<synchronous>, transform_indices = @transform_9, window_bounds = array<i64: 128, 128>}, {pipeline_mode = #tpu.pipeline_mode<synchronous>, transform_indices = @transform_10, window_bounds = array<i64: 1, 128>}, {pipeline_mode = #tpu.pipeline_mode<synchronous>, transform_indices = @transform_11, window_bounds = array<i64: 1, 40>}, {transform_indices = @transform_12, window_bounds = array<i64: 40, 40>}, {transform_indices = @transform_13, window_bounds = array<i64: 40, 128>}]} {
    %c0_i32 = arith.constant 0 : i32
    %0 = arith.cmpi eq, %arg0, %c0_i32 : i32
    %1 = arith.extui %0 : i1 to i32
    %c0_i32_0 = arith.constant 0 : i32
    %2 = arith.cmpi ne, %1, %c0_i32_0 : i32
    scf.if %2 {
      %c0_28 = arith.constant 0 : index
      %c0_29 = arith.constant 0 : index
      %41 = vector.load %arg1[%c0_28, %c0_29] : memref<40x128xf32, #tpu.memory_space<vmem>>, vector<40x128xf32>
      %c0_30 = arith.constant 0 : index
      %c0_31 = arith.constant 0 : index
      %42 = vector.load %arg4[%c0_30, %c0_31] : memref<128x256xf32, #tpu.memory_space<vmem>>, vector<128x256xf32>
      %cst_32 = arith.constant dense<0.000000e+00> : vector<40x256xf32>
      %43 = tpu.matmul %41, %42, %cst_32 {dimension_numbers = #tpu.dot_dimension_numbers<[1], [0], [0], [1], [0, 0, 1, 1], [], []>} : vector<40x128xf32>, vector<128x256xf32>, vector<40x256xf32> -> vector<40x256xf32>
      %c0_33 = arith.constant 0 : index
      %c0_34 = arith.constant 0 : index
      %44 = vector.load %arg5[%c0_33, %c0_34] : memref<1x256xf32, #tpu.memory_space<vmem>>, vector<1x256xf32>
      %45 = vector.broadcast %44 : vector<1x256xf32> to vector<40x256xf32>
      %46 = arith.addf %43, %45 : vector<40x256xf32>
      %47 = vector.extract_strided_slice %46 {offsets = [0, 0], sizes = [40, 128], strides = [1, 1]} : vector<40x256xf32> to vector<40x128xf32>
      %48 = vector.extract_strided_slice %46 {offsets = [0, 128], sizes = [40, 128], strides = [1, 1]} : vector<40x256xf32> to vector<40x128xf32>
      %c0_35 = arith.constant 0 : index
      %c0_36 = arith.constant 0 : index
      %49 = vector.load %arg6[%c0_35, %c0_36] : memref<128x128xf32, #tpu.memory_space<vmem>>, vector<128x128xf32>
      %cst_37 = arith.constant dense<0.000000e+00> : vector<40x128xf32>
      %50 = tpu.matmul %48, %49, %cst_37 {dimension_numbers = #tpu.dot_dimension_numbers<[1], [0], [0], [1], [0, 0, 1, 1], [], []>} : vector<40x128xf32>, vector<128x128xf32>, vector<40x128xf32> -> vector<40x128xf32>
      %c0_38 = arith.constant 0 : index
      %c0_39 = arith.constant 0 : index
      %51 = vector.load %arg7[%c0_38, %c0_39] : memref<1x128xf32, #tpu.memory_space<vmem>>, vector<1x128xf32>
      %52 = vector.broadcast %51 : vector<1x128xf32> to vector<40x128xf32>
      %53 = arith.addf %50, %52 : vector<40x128xf32>
      %c0_40 = arith.constant 0 : index
      %c0_41 = arith.constant 0 : index
      %54 = vector.load %arg15[%c0_40, %c0_41] : memref<40x128xf32, #tpu.memory_space<vmem>>, vector<40x128xf32>
      tpu.vector_store %arg15[%c0_40, %c0_41], %47 {strides = array<i32>} : memref<40x128xf32, #tpu.memory_space<vmem>>, vector<40x128xf32>,
      %c0_42 = arith.constant 0 : index
      %c0_43 = arith.constant 0 : index
      %55 = vector.load %arg16[%c0_42, %c0_43] : memref<40x128xf32, #tpu.memory_space<vmem>>, vector<40x128xf32>
      tpu.vector_store %arg16[%c0_42, %c0_43], %53 {strides = array<i32>} : memref<40x128xf32, #tpu.memory_space<vmem>>, vector<40x128xf32>,
    } else {
    }
    %c40_i32 = arith.constant 40 : i32
    %3 = arith.muli %arg0, %c40_i32 : i32
    %4 = tpu.assume_multiple %3, 40 : i32
    %5 = arith.index_cast %4 : i32 to index
    %c0 = arith.constant 0 : index
    %6 = vector.load %arg1[%5, %c0] : memref<40x128xf32, #tpu.memory_space<vmem>>, vector<40x128xf32>
    %c0_1 = arith.constant 0 : index
    %c0_2 = arith.constant 0 : index
    %7 = vector.load %arg2[%c0_1, %c0_2] : memref<128x128xf32, #tpu.memory_space<vmem>>, vector<128x128xf32>
    %cst = arith.constant dense<0.000000e+00> : vector<40x128xf32>
    %8 = tpu.matmul %6, %7, %cst {dimension_numbers = #tpu.dot_dimension_numbers<[1], [0], [0], [1], [0, 0, 1, 1], [], []>} : vector<40x128xf32>, vector<128x128xf32>, vector<40x128xf32> -> vector<40x128xf32>
    %c0_3 = arith.constant 0 : index
    %c0_4 = arith.constant 0 : index
    %9 = vector.load %arg3[%c0_3, %c0_4] : memref<1x128xf32, #tpu.memory_space<vmem>>, vector<1x128xf32>
    %10 = vector.broadcast %9 : vector<1x128xf32> to vector<40x128xf32>
    %11 = arith.addf %8, %10 : vector<40x128xf32>
    %c0_5 = arith.constant 0 : index
    %c0_6 = arith.constant 0 : index
    %12 = vector.load %arg15[%c0_5, %c0_6] : memref<40x128xf32, #tpu.memory_space<vmem>>, vector<40x128xf32>
    %cst_7 = arith.constant dense<0.000000e+00> : vector<40x40xf32>
    %13 = tpu.matmul %11, %12, %cst_7 {dimension_numbers = #tpu.dot_dimension_numbers<[1], [1], [0], [0], [0, 0, 1, 0], [], []>} : vector<40x128xf32>, vector<40x128xf32>, vector<40x40xf32> -> vector<40x40xf32>
    %cst_8 = arith.constant dense<0xFF800000> : vector<40xf32>
    %14 = vector.multi_reduction <maximumf>, %13, %cst_8 [1] : vector<40x40xf32> to vector<40xf32>
    %15 = vector.shape_cast %14 : vector<40xf32> to vector<40x1xf32>
    %16 = vector.broadcast %15 : vector<40x1xf32> to vector<40x40xf32>
    %17 = arith.subf %13, %16 : vector<40x40xf32>
    %18 = math.exp %17 : vector<40x40xf32>
    %cst_9 = arith.constant dense<0.000000e+00> : vector<40xf32>
    %19 = vector.multi_reduction <add>, %18, %cst_9 [1] : vector<40x40xf32> to vector<40xf32>
    %20 = vector.shape_cast %19 : vector<40xf32> to vector<40x1xf32>
    %21 = vector.broadcast %20 : vector<40x1xf32> to vector<40x40xf32>
    %22 = arith.divf %18, %21 : vector<40x40xf32>
    %c0_10 = arith.constant 0 : index
    %c0_11 = arith.constant 0 : index
    %23 = vector.load %arg16[%c0_10, %c0_11] : memref<40x128xf32, #tpu.memory_space<vmem>>, vector<40x128xf32>
    %cst_12 = arith.constant dense<0.000000e+00> : vector<40x128xf32>
    %24 = tpu.matmul %22, %23, %cst_12 {dimension_numbers = #tpu.dot_dimension_numbers<[1], [0], [0], [1], [0, 0, 1, 1], [], []>} : vector<40x40xf32>, vector<40x128xf32>, vector<40x128xf32> -> vector<40x128xf32>
    %25 = arith.addf %6, %24 : vector<40x128xf32>
    %c0_13 = arith.constant 0 : index
    %c0_14 = arith.constant 0 : index
    %26 = vector.load %arg8[%c0_13, %c0_14] : memref<128x128xf32, #tpu.memory_space<vmem>>, vector<128x128xf32>
    %cst_15 = arith.constant dense<0.000000e+00> : vector<40x128xf32>
    %27 = tpu.matmul %25, %26, %cst_15 {dimension_numbers = #tpu.dot_dimension_numbers<[1], [0], [0], [1], [0, 0, 1, 1], [], []>} : vector<40x128xf32>, vector<128x128xf32>, vector<40x128xf32> -> vector<40x128xf32>
    %c0_16 = arith.constant 0 : index
    %c0_17 = arith.constant 0 : index
    %28 = vector.load %arg9[%c0_16, %c0_17] : memref<1x128xf32, #tpu.memory_space<vmem>>, vector<1x128xf32>
    %29 = vector.broadcast %28 : vector<1x128xf32> to vector<40x128xf32>
    %30 = arith.addf %27, %29 : vector<40x128xf32>
    %cst_18 = arith.constant 0.000000e+00 : f32
    %31 = vector.broadcast %cst_18 : f32 to vector<40x128xf32>
    %32 = arith.maximumf %30, %31 : vector<40x128xf32>
    %c0_19 = arith.constant 0 : index
    %c0_20 = arith.constant 0 : index
    %33 = vector.load %arg10[%c0_19, %c0_20] : memref<128x128xf32, #tpu.memory_space<vmem>>, vector<128x128xf32>
    %cst_21 = arith.constant dense<0.000000e+00> : vector<40x128xf32>
    %34 = tpu.matmul %32, %33, %cst_21 {dimension_numbers = #tpu.dot_dimension_numbers<[1], [0], [0], [1], [0, 0, 1, 1], [], []>} : vector<40x128xf32>, vector<128x128xf32>, vector<40x128xf32> -> vector<40x128xf32>
    %c0_22 = arith.constant 0 : index
    %c0_23 = arith.constant 0 : index
    %35 = vector.load %arg11[%c0_22, %c0_23] : memref<1x128xf32, #tpu.memory_space<vmem>>, vector<1x128xf32>
    %36 = vector.broadcast %35 : vector<1x128xf32> to vector<40x128xf32>
    %37 = arith.addf %34, %36 : vector<40x128xf32>
    %c0_24 = arith.constant 0 : index
    %c0_25 = arith.constant 0 : index
    %38 = vector.load %arg13[%c0_24, %c0_25] : memref<40x40xf32, #tpu.memory_space<vmem>>, vector<40x40xf32>
    tpu.vector_store %arg13[%c0_24, %c0_25], %22 {strides = array<i32>} : memref<40x40xf32, #tpu.memory_space<vmem>>, vector<40x40xf32>,
    %39 = arith.addf %37, %25 : vector<40x128xf32>
    %c0_26 = arith.constant 0 : index
    %c0_27 = arith.constant 0 : index
    %40 = vector.load %arg14[%c0_26, %c0_27] : memref<40x128xf32, #tpu.memory_space<vmem>>, vector<40x128xf32>
    tpu.vector_store %arg14[%c0_26, %c0_27], %39 {strides = array<i32>} : memref<40x128xf32, #tpu.memory_space<vmem>>, vector<40x128xf32>,
    return
  }
  func.func @transform_0(%arg0: i32) -> (i32, i32) {
    %c0_i32 = arith.constant 0 : i32
    %c0_i32_0 = arith.constant 0 : i32
    %c0_i32_1 = arith.constant 0 : i32
    return %c0_i32, %c0_i32_0 : i32, i32
  }
  func.func @transform_1(%arg0: i32) -> (i32, i32) {
    %c0_i32 = arith.constant 0 : i32
    %c0_i32_0 = arith.constant 0 : i32
    %c0_i32_1 = arith.constant 0 : i32
    return %c0_i32, %c0_i32_0 : i32, i32
  }
  func.func @transform_2(%arg0: i32) -> (i32, i32) {
    %c0_i32 = arith.constant 0 : i32
    %c0_i32_0 = arith.constant 0 : i32
    %c0_i32_1 = arith.constant 0 : i32
    return %c0_i32, %c0_i32_0 : i32, i32
  }
  func.func @transform_3(%arg0: i32) -> (i32, i32) {
    %c0_i32 = arith.constant 0 : i32
    %c0_i32_0 = arith.constant 0 : i32
    %c0_i32_1 = arith.constant 0 : i32
    return %c0_i32, %c0_i32_0 : i32, i32
  }
  func.func @transform_4(%arg0: i32) -> (i32, i32) {
    %c0_i32 = arith.constant 0 : i32
    %c0_i32_0 = arith.constant 0 : i32
    %c0_i32_1 = arith.constant 0 : i32
    return %c0_i32, %c0_i32_0 : i32, i32
  }
  func.func @transform_5(%arg0: i32) -> (i32, i32) {
    %c0_i32 = arith.constant 0 : i32
    %c0_i32_0 = arith.constant 0 : i32
    %c0_i32_1 = arith.constant 0 : i32
    return %c0_i32, %c0_i32_0 : i32, i32
  }
  func.func @transform_6(%arg0: i32) -> (i32, i32) {
    %c0_i32 = arith.constant 0 : i32
    %c0_i32_0 = arith.constant 0 : i32
    %c0_i32_1 = arith.constant 0 : i32
    return %c0_i32, %c0_i32_0 : i32, i32
  }
  func.func @transform_7(%arg0: i32) -> (i32, i32) {
    %c0_i32 = arith.constant 0 : i32
    %c0_i32_0 = arith.constant 0 : i32
    %c0_i32_1 = arith.constant 0 : i32
    return %c0_i32, %c0_i32_0 : i32, i32
  }
  func.func @transform_8(%arg0: i32) -> (i32, i32) {
    %c0_i32 = arith.constant 0 : i32
    %c0_i32_0 = arith.constant 0 : i32
    %c0_i32_1 = arith.constant 0 : i32
    return %c0_i32, %c0_i32_0 : i32, i32
  }
  func.func @transform_9(%arg0: i32) -> (i32, i32) {
    %c0_i32 = arith.constant 0 : i32
    %c0_i32_0 = arith.constant 0 : i32
    %c0_i32_1 = arith.constant 0 : i32
    return %c0_i32, %c0_i32_0 : i32, i32
  }
  func.func @transform_10(%arg0: i32) -> (i32, i32) {
    %c0_i32 = arith.constant 0 : i32
    %c0_i32_0 = arith.constant 0 : i32
    %c0_i32_1 = arith.constant 0 : i32
    return %c0_i32, %c0_i32_0 : i32, i32
  }
  func.func @transform_11(%arg0: i32) -> (i32, i32) {
    %c0_i32 = arith.constant 0 : i32
    %c0_i32_0 = arith.constant 0 : i32
    %c0_i32_1 = arith.constant 0 : i32
    return %c0_i32, %c0_i32_0 : i32, i32
  }
  func.func @transform_12(%arg0: i32) -> (i32, i32) {
    %c0_i32 = arith.constant 0 : i32
    %c0_i32_0 = arith.constant 0 : i32
    return %arg0, %c0_i32 : i32, i32
  }
  func.func @transform_13(%arg0: i32) -> (i32, i32) {
    %c0_i32 = arith.constant 0 : i32
    %c0_i32_0 = arith.constant 0 : i32
    return %arg0, %c0_i32 : i32, i32
  }
}

</mosaic_0001>

<llo_original>
// kernel: transformer_layer.1
$region0: #{transformer_layer.1}
  #allocation0 [shape = 'u32[]', space=smem, size = 0x4, offset = 0x4, fixed_abs, tag = 'smem constant byte address 0x4 - core index']
  #allocation1 [shape = 'u32[144,128]{1,0:T(1,128)}', space=vmem, size = 0x12000, scoped, tag = 'internal scratch']
  #allocation2 [shape = 'f32[40,128]{1,0:T(8,128)}', space=vmem, size = 0x5000, scoped, tag = 'scratch operand']
  #allocation3 [shape = 'f32[40,128]{1,0:T(8,128)}', space=vmem, size = 0x5000, scoped, tag = 'scratch operand']
  %s0 = inlined_call_operand.vmem [shape: f32[40,128], index: 0, kind: input, shape index: {}]
  %s1 = inlined_call_operand.vmem [shape: f32[128,128], index: 1, kind: input, shape index: {}]
  %s2 = inlined_call_operand.vmem [shape: f32[1,128], index: 2, kind: input, shape index: {}]
  %s3 = inlined_call_operand.vmem [shape: f32[128,256], index: 3, kind: input, shape index: {}]
  %s4 = inlined_call_operand.vmem [shape: f32[1,256], index: 4, kind: input, shape index: {}]
  %s5 = inlined_call_operand.vmem [shape: f32[128,128], index: 5, kind: input, shape index: {}]
  %s6 = inlined_call_operand.vmem [shape: f32[1,128], index: 6, kind: input, shape index: {}]
  %s7 = inlined_call_operand.vmem [shape: f32[128,128], index: 7, kind: input, shape index: {}]
  %s8 = inlined_call_operand.vmem [shape: f32[1,128], index: 8, kind: input, shape index: {}]
  %s9 = inlined_call_operand.vmem [shape: f32[128,128], index: 9, kind: input, shape index: {}]
  %s10 = inlined_call_operand.vmem [shape: f32[1,128], index: 10, kind: input, shape index: {}]
  %s11 = inlined_call_operand.vmem [shape: f32[1,40], index: 11, kind: input, shape index: {}]
  %s12 = inlined_call_operand.hbm [shape: f32[40,40], index: 12, kind: output, shape index: {0}]
  %s13 = inlined_call_operand.vmem [shape: f32[40,128], index: 13, kind: output, shape index: {1}]
  %14 = xla_tuple %s12, %s13
  %s15 = sld [smem:[#allocation0]]
  $region70: #{transformer_layer.1} parent=0
    _
  %s17 = ssub.s32 1, %s15
  %s18 = scalar_select 0, %s17, %s15
  $region1: #{transformer_layer.1} parent=0
    #allocation4 [shape = 'u8[20480]{0}', space=vmem, size = 0x5000, scoped, tag = 'output window, operand 0, single buffered']
    #allocation5 [shape = 's32[1]{0}', space=sflag, size = 0x4, scoped, tag = 'scoped memory for transformer_layer.1']
    %19 = vsyncpa [#allocation5], 0
    // Predicated region
    $region2: #{transformer_layer.1} parent=1 // pred_check
      _
    $region3: #{transformer_layer.1} parent=1 // pred_check_branch
      %21 = sbr.rel (0) target = $region5
    $region4: #{transformer_layer.1} parent=1 // pred_region
      _
    $region5: #{transformer_layer.1} parent=1 // pred_fallthru
      _
    // Predicated region
    $region6: #{transformer_layer.1} parent=1 // pred_check
      _
    $region7: #{transformer_layer.1} parent=1 // pred_check_branch
      %23 = sbr.rel (0) target = $region9
    $region8: #{transformer_layer.1} parent=1 // pred_region
      _
    $region9: #{transformer_layer.1} parent=1 // pred_fallthru
      _
    // Predicated region
    $region10: #{transformer_layer.1} parent=1 // pred_check
      _
    $region11: #{transformer_layer.1} parent=1 // pred_check_branch
      %25 = sbr.rel (0) target = $region13
    $region12: #{transformer_layer.1} parent=1 // pred_region
      _
    $region13: #{transformer_layer.1} parent=1 // pred_fallthru
      _
    // Predicated region
    $region14: #{transformer_layer.1} parent=1 // pred_check
      _
    $region15: #{transformer_layer.1} parent=1 // pred_check_branch
      %27 = sbr.rel (0) target = $region17
    $region16: #{transformer_layer.1} parent=1 // pred_region
      _
    $region17: #{transformer_layer.1} parent=1 // pred_fallthru
      _
    // Predicated region
    $region18: #{transformer_layer.1} parent=1 // pred_check
      _
    $region19: #{transformer_layer.1} parent=1 // pred_check_branch
      %29 = sbr.rel (0) target = $region21
    $region20: #{transformer_layer.1} parent=1 // pred_region
      _
    $region21: #{transformer_layer.1} parent=1 // pred_fallthru
      _
    // Predicated region
    $region22: #{transformer_layer.1} parent=1 // pred_check
      _
    $region23: #{transformer_layer.1} parent=1 // pred_check_branch
      %31 = sbr.rel (0) target = $region25
    $region24: #{transformer_layer.1} parent=1 // pred_region
      _
    $region25: #{transformer_layer.1} parent=1 // pred_fallthru
      _
    // Predicated region
    $region26: #{transformer_layer.1} parent=1 // pred_check
      _
    $region27: #{transformer_layer.1} parent=1 // pred_check_branch
      %33 = sbr.rel (0) target = $region29
    $region28: #{transformer_layer.1} parent=1 // pred_region
      _
    $region29: #{transformer_layer.1} parent=1 // pred_fallthru
      _
    // Predicated region
    $region30: #{transformer_layer.1} parent=1 // pred_check
      _
    $region31: #{transformer_layer.1} parent=1 // pred_check_branch
      %35 = sbr.rel (0) target = $region33
    $region32: #{transformer_layer.1} parent=1 // pred_region
      _
    $region33: #{transformer_layer.1} parent=1 // pred_fallthru
      _
    // Predicated region
    $region34: #{transformer_layer.1} parent=1 // pred_check
      _
    $region35: #{transformer_layer.1} parent=1 // pred_check_branch
      %37 = sbr.rel (0) target = $region37
    $region36: #{transformer_layer.1} parent=1 // pred_region
      _
    $region37: #{transformer_layer.1} parent=1 // pred_fallthru
      _
    // Predicated region
    $region38: #{transformer_layer.1} parent=1 // pred_check
      _
    $region39: #{transformer_layer.1} parent=1 // pred_check_branch
      %39 = sbr.rel (0) target = $region41
    $region40: #{transformer_layer.1} parent=1 // pred_region
      _
    $region41: #{transformer_layer.1} parent=1 // pred_fallthru
      _
    // Predicated region
    $region42: #{transformer_layer.1} parent=1 // pred_check
      _
    $region43: #{transformer_layer.1} parent=1 // pred_check_branch
      %41 = sbr.rel (0) target = $region45
    $region44: #{transformer_layer.1} parent=1 // pred_region
      _
    $region45: #{transformer_layer.1} parent=1 // pred_fallthru
      _
    // Predicated region
    $region46: #{transformer_layer.1} parent=1 // pred_check
      _
    $region47: #{transformer_layer.1} parent=1 // pred_check_branch
      %43 = sbr.rel (0) target = $region49
    $region48: #{transformer_layer.1} parent=1 // pred_region
      _
    $region49: #{transformer_layer.1} parent=1 // pred_fallthru
      _
    %p44 = scmp.eq.s32.totalorder 0, 0
    // Predicated region
    $region50: #{transformer_layer.1} parent=1 // pred_check
      %p45 = pneg %p44
    $region51: #{transformer_layer.1} parent=1 // pred_check_branch
      %47 = sbr.rel (%p45) target = $region53
    $region52: #{transformer_layer.1} parent=1 // pred_region
      %v48 = vld [vmem:[%s0] sm:$0xff]
      %v49 = vld [vmem:[%s0 + $0x8] sm:$0xff]
      %v50 = vld [vmem:[%s0 + $0x10] sm:$0xff]
      %v51 = vld [vmem:[%s0 + $0x18] sm:$0xff]
      %v52 = vld [vmem:[%s0 + $0x20] sm:$0xff]
      %v53 = vld [vmem:[%s3] sm:$0xff]
      %v54 = vld [vmem:[%s3 + $0x8] sm:$0xff]
      %v55 = vld [vmem:[%s3 + $0x10] sm:$0xff]
      %v56 = vld [vmem:[%s3 + $0x18] sm:$0xff]
      %v57 = vld [vmem:[%s3 + $0x20] sm:$0xff]
      %v58 = vld [vmem:[%s3 + $0x28] sm:$0xff]
      %v59 = vld [vmem:[%s3 + $0x30] sm:$0xff]
      %v60 = vld [vmem:[%s3 + $0x38] sm:$0xff]
      %v61 = vld [vmem:[%s3 + $0x40] sm:$0xff]
      %v62 = vld [vmem:[%s3 + $0x48] sm:$0xff]
      %v63 = vld [vmem:[%s3 + $0x50] sm:$0xff]
      %v64 = vld [vmem:[%s3 + $0x58] sm:$0xff]
      %v65 = vld [vmem:[%s3 + $0x60] sm:$0xff]
      %v66 = vld [vmem:[%s3 + $0x68] sm:$0xff]
      %v67 = vld [vmem:[%s3 + $0x70] sm:$0xff]
      %v68 = vld [vmem:[%s3 + $0x78] sm:$0xff]
      %v69 = vld [vmem:[%s3 + $0x80] sm:$0xff]
      %v70 = vld [vmem:[%s3 + $0x88] sm:$0xff]
      %v71 = vld [vmem:[%s3 + $0x90] sm:$0xff]
      %v72 = vld [vmem:[%s3 + $0x98] sm:$0xff]
      %v73 = vld [vmem:[%s3 + $0xa0] sm:$0xff]
      %v74 = vld [vmem:[%s3 + $0xa8] sm:$0xff]
      %v75 = vld [vmem:[%s3 + $0xb0] sm:$0xff]
      %v76 = vld [vmem:[%s3 + $0xb8] sm:$0xff]
      %v77 = vld [vmem:[%s3 + $0xc0] sm:$0xff]
      %v78 = vld [vmem:[%s3 + $0xc8] sm:$0xff]
      %v79 = vld [vmem:[%s3 + $0xd0] sm:$0xff]
      %v80 = vld [vmem:[%s3 + $0xd8] sm:$0xff]
      %v81 = vld [vmem:[%s3 + $0xe0] sm:$0xff]
      %v82 = vld [vmem:[%s3 + $0xe8] sm:$0xff]
      %v83 = vld [vmem:[%s3 + $0xf0] sm:$0xff]
      %v84 = vld [vmem:[%s3 + $0xf8] sm:$0xff]
      %v85 = vld [vmem:[%s4] sm:$0x3]
      %v87 = vlaneseq
      %v88 = vshrl.u32 %v87, 7
      %v89 = vsub.s32 0, %v88
      %v90 = vrot.slane %v85, %v89
      %v91 = vlaneseq
      %v92 = vshrl.u32 %v91, 7
      %v93 = vsub.s32 1, %v92
      %v94 = vrot.slane %v85, %v93
      %97 = vmatprep.subr.mxu0 %v84
      %98 = vmatpush1.msra.mxu0 %v83
      %99 = vmatprep.subr.mxu0 %v82
      %100 = vmatpush1.msra.mxu0 %v81
      %101 = vmatprep.subr.mxu0 %v80
      %102 = vmatpush1.msra.mxu0 %v79
      %103 = vmatprep.subr.mxu0 %v78
      %104 = vmatpush1.msra.mxu0 %v77
      %105 = vmatprep.subr.mxu0 %v76
      %106 = vmatpush1.msra.mxu0 %v75
      %107 = vmatprep.subr.mxu0 %v74
      %108 = vmatpush1.msra.mxu0 %v73
      %109 = vmatprep.subr.mxu0 %v72
      %110 = vmatpush1.msra.mxu0 %v71
      %111 = vmatprep.subr.mxu0 %v70
      %112 = vmatpush1.msra.mxu0 %v69
      %113 = vmatprep.subr.mxu0 %v68
      %114 = vmatpush1.msra.mxu0 %v67
      %115 = vmatprep.subr.mxu0 %v66
      %116 = vmatpush1.msra.mxu0 %v65
      %117 = vmatprep.subr.mxu0 %v64
      %118 = vmatpush1.msra.mxu0 %v63
      %119 = vmatprep.subr.mxu0 %v62
      %120 = vmatpush1.msra.mxu0 %v61
      %121 = vmatprep.subr.mxu0 %v60
      %122 = vmatpush1.msra.mxu0 %v59
      %123 = vmatprep.subr.mxu0 %v58
      %124 = vmatpush1.msra.mxu0 %v57
      %125 = vmatprep.subr.mxu0 %v56
      %126 = vmatpush1.msra.mxu0 %v55
      %127 = vmatprep.subr.mxu0 %v54
      %128 = vmatpush1.msra.mxu0 %v53
      %129 = vmatprep.subr.mxu0 0.0
      %130 = vmatpush2.msra.mxu0 0.0
      %131 = vmatprep.subr.mxu0 0.0
      %132 = vmatpush2.msra.mxu0 0.0
      %133 = vmatprep.subr.mxu0 0.0
      %134 = vmatpush2.msra.mxu0 0.0
      %135 = vmatprep.subr.mxu0 0.0
      %136 = vmatpush2.msra.mxu0 0.0
      %137 = vmatprep.subr.mxu0 0.0
      %138 = vmatpush2.msra.mxu0 0.0
      %139 = vmatprep.subr.mxu0 0.0
      %140 = vmatpush2.msra.mxu0 0.0
      %141 = vmatprep.subr.mxu0 0.0
      %142 = vmatpush2.msra.mxu0 0.0
      %143 = vmatprep.subr.mxu0 0.0
      %144 = vmatpush2.msra.mxu0 0.0
      %145 = vmatprep.subr.mxu0 0.0
      %146 = vmatpush2.msra.mxu0 0.0
      %147 = vmatprep.subr.mxu0 0.0
      %148 = vmatpush2.msra.mxu0 0.0
      %149 = vmatprep.subr.mxu0 0.0
      %150 = vmatpush2.msra.mxu0 0.0
      %151 = vmatprep.subr.mxu0 0.0
      %152 = vmatpush2.msra.mxu0 0.0
      %153 = vmatprep.subr.mxu0 0.0
      %154 = vmatpush2.msra.mxu0 0.0
      %155 = vmatprep.subr.mxu0 0.0
      %156 = vmatpush2.msra.mxu0 0.0
      %157 = vmatprep.subr.mxu0 0.0
      %158 = vmatpush2.msra.mxu0 0.0
      %159 = vmatprep.subr.mxu0 0.0
      %160 = vmatpush2.msra.mxu0 0.0
      %161 = vmatprep.mubr.f32.mxu0 0.0
      %162 = vmatmul.mubr.f32.gmra.mxu0 %v48
      %v163 = vpop.f32.mrf.mxu0
      %v164 = vadd.f32 %v90, %v163
      %v165 = vpop.f32.mrf.mxu0
      %v166 = vadd.f32 %v94, %v165
      %167 = vmatprep.mubr.f32.mxu0 0.0
      %168 = vmatmul.mubr.f32.gmra.mxu0 %v49
      %v169 = vpop.f32.mrf.mxu0
      %v170 = vadd.f32 %v90, %v169
      %v171 = vpop.f32.mrf.mxu0
      %v172 = vadd.f32 %v94, %v171
      %173 = vmatprep.mubr.f32.mxu0 0.0
      %174 = vmatmul.mubr.f32.gmra.mxu0 %v50
      %v175 = vpop.f32.mrf.mxu0
      %v176 = vadd.f32 %v90, %v175
      %v177 = vpop.f32.mrf.mxu0
      %v178 = vadd.f32 %v94, %v177
      %179 = vmatprep.mubr.f32.mxu0 0.0
      %180 = vmatmul.mubr.f32.gmra.mxu0 %v51
      %v181 = vpop.f32.mrf.mxu0
      %v182 = vadd.f32 %v90, %v181
      %v183 = vpop.f32.mrf.mxu0
      %v184 = vadd.f32 %v94, %v183
      %185 = vmatprep.mubr.f32.mxu0 0.0
      %186 = vmatmul.mubr.f32.gmra.mxu0 %v52
      %v187 = vpop.f32.mrf.mxu0
      %v188 = vadd.f32 %v90, %v187
      %v189 = vpop.f32.mrf.mxu0
      %v190 = vadd.f32 %v94, %v189
      %191 = vdwg.mxu0
      %v192 = vld [vmem:[%s5] sm:$0xff]
      %v193 = vld [vmem:[%s5 + $0x8] sm:$0xff]
      %v194 = vld [vmem:[%s5 + $0x10] sm:$0xff]
      %v195 = vld [vmem:[%s5 + $0x18] sm:$0xff]
      %v196 = vld [vmem:[%s5 + $0x20] sm:$0xff]
      %v197 = vld [vmem:[%s5 + $0x28] sm:$0xff]
      %v198 = vld [vmem:[%s5 + $0x30] sm:$0xff]
      %v199 = vld [vmem:[%s5 + $0x38] sm:$0xff]
      %v200 = vld [vmem:[%s5 + $0x40] sm:$0xff]
      %v201 = vld [vmem:[%s5 + $0x48] sm:$0xff]
      %v202 = vld [vmem:[%s5 + $0x50] sm:$0xff]
      %v203 = vld [vmem:[%s5 + $0x58] sm:$0xff]
      %v204 = vld [vmem:[%s5 + $0x60] sm:$0xff]
      %v205 = vld [vmem:[%s5 + $0x68] sm:$0xff]
      %v206 = vld [vmem:[%s5 + $0x70] sm:$0xff]
      %v207 = vld [vmem:[%s5 + $0x78] sm:$0xff]
      %v208 = vld [vmem:[%s6] sm:$0x1]
      %v210 = vlaneseq
      %v211 = vshrl.u32 %v210, 7
      %v212 = vsub.s32 0, %v211
      %v213 = vrot.slane %v208, %v212
      %215 = vmatprep.subr.mxu0 0.0
      %216 = vmatpush1.msra.mxu0 %v207
      %217 = vmatprep.subr.mxu0 0.0
      %218 = vmatpush1.msra.mxu0 %v206
      %219 = vmatprep.subr.mxu0 0.0
      %220 = vmatpush1.msra.mxu0 %v205
      %221 = vmatprep.subr.mxu0 0.0
      %222 = vmatpush1.msra.mxu0 %v204
      %223 = vmatprep.subr.mxu0 0.0
      %224 = vmatpush1.msra.mxu0 %v203
      %225 = vmatprep.subr.mxu0 0.0
      %226 = vmatpush1.msra.mxu0 %v202
      %227 = vmatprep.subr.mxu0 0.0
      %228 = vmatpush1.msra.mxu0 %v201
      %229 = vmatprep.subr.mxu0 0.0
      %230 = vmatpush1.msra.mxu0 %v200
      %231 = vmatprep.subr.mxu0 0.0
      %232 = vmatpush1.msra.mxu0 %v199
      %233 = vmatprep.subr.mxu0 0.0
      %234 = vmatpush1.msra.mxu0 %v198
      %235 = vmatprep.subr.mxu0 0.0
      %236 = vmatpush1.msra.mxu0 %v197
      %237 = vmatprep.subr.mxu0 0.0
      %238 = vmatpush1.msra.mxu0 %v196
      %239 = vmatprep.subr.mxu0 0.0
      %240 = vmatpush1.msra.mxu0 %v195
      %241 = vmatprep.subr.mxu0 0.0
      %242 = vmatpush1.msra.mxu0 %v194
      %243 = vmatprep.subr.mxu0 0.0
      %244 = vmatpush1.msra.mxu0 %v193
      %245 = vmatprep.subr.mxu0 0.0
      %246 = vmatpush1.msra.mxu0 %v192
      %247 = vmatprep.subr.mxu0 0.0
      %248 = vmatpush2.msra.mxu0 0.0
      %249 = vmatprep.subr.mxu0 0.0
      %250 = vmatpush2.msra.mxu0 0.0
      %251 = vmatprep.subr.mxu0 0.0
      %252 = vmatpush2.msra.mxu0 0.0
      %253 = vmatprep.subr.mxu0 0.0
      %254 = vmatpush2.msra.mxu0 0.0
      %255 = vmatprep.subr.mxu0 0.0
      %256 = vmatpush2.msra.mxu0 0.0
      %257 = vmatprep.subr.mxu0 0.0
      %258 = vmatpush2.msra.mxu0 0.0
      %259 = vmatprep.subr.mxu0 0.0
      %260 = vmatpush2.msra.mxu0 0.0
      %261 = vmatprep.subr.mxu0 0.0
      %262 = vmatpush2.msra.mxu0 0.0
      %263 = vmatprep.subr.mxu0 0.0
      %264 = vmatpush2.msra.mxu0 0.0
      %265 = vmatprep.subr.mxu0 0.0
      %266 = vmatpush2.msra.mxu0 0.0
      %267 = vmatprep.subr.mxu0 0.0
      %268 = vmatpush2.msra.mxu0 0.0
      %269 = vmatprep.subr.mxu0 0.0
      %270 = vmatpush2.msra.mxu0 0.0
      %271 = vmatprep.subr.mxu0 0.0
      %272 = vmatpush2.msra.mxu0 0.0
      %273 = vmatprep.subr.mxu0 0.0
      %274 = vmatpush2.msra.mxu0 0.0
      %275 = vmatprep.subr.mxu0 0.0
      %276 = vmatpush2.msra.mxu0 0.0
      %277 = vmatprep.subr.mxu0 0.0
      %278 = vmatpush2.msra.mxu0 0.0
      %279 = vmatprep.mubr.f32.mxu0 0.0
      %280 = vmatmul.mubr.f32.gmra.mxu0 %v166
      %v281 = vpop.f32.mrf.mxu0
      %v282 = vadd.f32 %v213, %v281
      %v283 = vpop.f32.mrf.mxu0
      %284 = vmatprep.mubr.f32.mxu0 0.0
      %285 = vmatmul.mubr.f32.gmra.mxu0 %v172
      %v286 = vpop.f32.mrf.mxu0
      %v287 = vadd.f32 %v213, %v286
      %v288 = vpop.f32.mrf.mxu0
      %289 = vmatprep.mubr.f32.mxu0 0.0
      %290 = vmatmul.mubr.f32.gmra.mxu0 %v178
      %v291 = vpop.f32.mrf.mxu0
      %v292 = vadd.f32 %v213, %v291
      %v293 = vpop.f32.mrf.mxu0
      %294 = vmatprep.mubr.f32.mxu0 0.0
      %295 = vmatmul.mubr.f32.gmra.mxu0 %v184
      %v296 = vpop.f32.mrf.mxu0
      %v297 = vadd.f32 %v213, %v296
      %v298 = vpop.f32.mrf.mxu0
      %299 = vmatprep.mubr.f32.mxu0 0.0
      %300 = vmatmul.mubr.f32.gmra.mxu0 %v190
      %v301 = vpop.f32.mrf.mxu0
      %v302 = vadd.f32 %v213, %v301
      %v303 = vpop.f32.mrf.mxu0
      %304 = vdwg.mxu0
      %305 = vst [vmem:[#allocation2] sm:$0xff] %v164
      %306 = vst [vmem:[#allocation2 + $0x8] sm:$0xff] %v170
      %307 = vst [vmem:[#allocation2 + $0x10] sm:$0xff] %v176
      %308 = vst [vmem:[#allocation2 + $0x18] sm:$0xff] %v182
      %309 = vst [vmem:[#allocation2 + $0x20] sm:$0xff] %v188
      %310 = vst [vmem:[#allocation3] sm:$0xff] %v282
      %311 = vst [vmem:[#allocation3 + $0x8] sm:$0xff] %v287
      %312 = vst [vmem:[#allocation3 + $0x10] sm:$0xff] %v292
      %313 = vst [vmem:[#allocation3 + $0x18] sm:$0xff] %v297
      %314 = vst [vmem:[#allocation3 + $0x20] sm:$0xff] %v302
    $region53: #{transformer_layer.1} parent=1 // pred_fallthru
      _
    %s315 = smul.u32 0, 40
    %s316 = scalar_lea.vmem %s0, %s315
    %v317 = vld [vmem:[%s316] sm:$0xff]
    %v318 = vld [vmem:[%s316 + $0x8] sm:$0xff]
    %v319 = vld [vmem:[%s316 + $0x10] sm:$0xff]
    %v320 = vld [vmem:[%s316 + $0x18] sm:$0xff]
    %v321 = vld [vmem:[%s316 + $0x20] sm:$0xff]
    %v322 = vld [vmem:[%s1] sm:$0xff]
    %v323 = vld [vmem:[%s1 + $0x8] sm:$0xff]
    %v324 = vld [vmem:[%s1 + $0x10] sm:$0xff]
    %v325 = vld [vmem:[%s1 + $0x18] sm:$0xff]
    %v326 = vld [vmem:[%s1 + $0x20] sm:$0xff]
    %v327 = vld [vmem:[%s1 + $0x28] sm:$0xff]
    %v328 = vld [vmem:[%s1 + $0x30] sm:$0xff]
    %v329 = vld [vmem:[%s1 + $0x38] sm:$0xff]
    %v330 = vld [vmem:[%s1 + $0x40] sm:$0xff]
    %v331 = vld [vmem:[%s1 + $0x48] sm:$0xff]
    %v332 = vld [vmem:[%s1 + $0x50] sm:$0xff]
    %v333 = vld [vmem:[%s1 + $0x58] sm:$0xff]
    %v334 = vld [vmem:[%s1 + $0x60] sm:$0xff]
    %v335 = vld [vmem:[%s1 + $0x68] sm:$0xff]
    %v336 = vld [vmem:[%s1 + $0x70] sm:$0xff]
    %v337 = vld [vmem:[%s1 + $0x78] sm:$0xff]
    %v338 = vld [vmem:[%s2] sm:$0x1]
    %v340 = vlaneseq
    %v341 = vshrl.u32 %v340, 7
    %v342 = vsub.s32 0, %v341
    %v343 = vrot.slane %v338, %v342
    %345 = vmatprep.subr.mxu0 0.0
    %346 = vmatpush1.msra.mxu0 %v337
    %347 = vmatprep.subr.mxu0 0.0
    %348 = vmatpush1.msra.mxu0 %v336
    %349 = vmatprep.subr.mxu0 0.0
    %350 = vmatpush1.msra.mxu0 %v335
    %351 = vmatprep.subr.mxu0 0.0
    %352 = vmatpush1.msra.mxu0 %v334
    %353 = vmatprep.subr.mxu0 0.0
    %354 = vmatpush1.msra.mxu0 %v333
    %355 = vmatprep.subr.mxu0 0.0
    %356 = vmatpush1.msra.mxu0 %v332
    %357 = vmatprep.subr.mxu0 0.0
    %358 = vmatpush1.msra.mxu0 %v331
    %359 = vmatprep.subr.mxu0 0.0
    %360 = vmatpush1.msra.mxu0 %v330
    %361 = vmatprep.subr.mxu0 0.0
    %362 = vmatpush1.msra.mxu0 %v329
    %363 = vmatprep.subr.mxu0 0.0
    %364 = vmatpush1.msra.mxu0 %v328
    %365 = vmatprep.subr.mxu0 0.0
    %366 = vmatpush1.msra.mxu0 %v327
    %367 = vmatprep.subr.mxu0 0.0
    %368 = vmatpush1.msra.mxu0 %v326
    %369 = vmatprep.subr.mxu0 0.0
    %370 = vmatpush1.msra.mxu0 %v325
    %371 = vmatprep.subr.mxu0 0.0
    %372 = vmatpush1.msra.mxu0 %v324
    %373 = vmatprep.subr.mxu0 0.0
    %374 = vmatpush1.msra.mxu0 %v323
    %375 = vmatprep.subr.mxu0 0.0
    %376 = vmatpush1.msra.mxu0 %v322
    %377 = vmatprep.subr.mxu0 0.0
    %378 = vmatpush2.msra.mxu0 0.0
    %379 = vmatprep.subr.mxu0 0.0
    %380 = vmatpush2.msra.mxu0 0.0
    %381 = vmatprep.subr.mxu0 0.0
    %382 = vmatpush2.msra.mxu0 0.0
    %383 = vmatprep.subr.mxu0 0.0
    %384 = vmatpush2.msra.mxu0 0.0
    %385 = vmatprep.subr.mxu0 0.0
    %386 = vmatpush2.msra.mxu0 0.0
    %387 = vmatprep.subr.mxu0 0.0
    %388 = vmatpush2.msra.mxu0 0.0
    %389 = vmatprep.subr.mxu0 0.0
    %390 = vmatpush2.msra.mxu0 0.0
    %391 = vmatprep.subr.mxu0 0.0
    %392 = vmatpush2.msra.mxu0 0.0
    %393 = vmatprep.subr.mxu0 0.0
    %394 = vmatpush2.msra.mxu0 0.0
    %395 = vmatprep.subr.mxu0 0.0
    %396 = vmatpush2.msra.mxu0 0.0
    %397 = vmatprep.subr.mxu0 0.0
    %398 = vmatpush2.msra.mxu0 0.0
    %399 = vmatprep.subr.mxu0 0.0
    %400 = vmatpush2.msra.mxu0 0.0
    %401 = vmatprep.subr.mxu0 0.0
    %402 = vmatpush2.msra.mxu0 0.0
    %403 = vmatprep.subr.mxu0 0.0
    %404 = vmatpush2.msra.mxu0 0.0
    %405 = vmatprep.subr.mxu0 0.0
    %406 = vmatpush2.msra.mxu0 0.0
    %407 = vmatprep.subr.mxu0 0.0
    %408 = vmatpush2.msra.mxu0 0.0
    %409 = vmatprep.mubr.f32.mxu0 0.0
    %410 = vmatmul.mubr.f32.gmra.mxu0 %v317
    %v411 = vpop.f32.mrf.mxu0
    %v412 = vadd.f32 %v343, %v411
    %v413 = vpop.f32.mrf.mxu0
    %414 = vmatprep.mubr.f32.mxu0 0.0
    %415 = vmatmul.mubr.f32.gmra.mxu0 %v318
    %v416 = vpop.f32.mrf.mxu0
    %v417 = vadd.f32 %v343, %v416
    %v418 = vpop.f32.mrf.mxu0
    %419 = vmatprep.mubr.f32.mxu0 0.0
    %420 = vmatmul.mubr.f32.gmra.mxu0 %v319
    %v421 = vpop.f32.mrf.mxu0
    %v422 = vadd.f32 %v343, %v421
    %v423 = vpop.f32.mrf.mxu0
    %424 = vmatprep.mubr.f32.mxu0 0.0
    %425 = vmatmul.mubr.f32.gmra.mxu0 %v320
    %v426 = vpop.f32.mrf.mxu0
    %v427 = vadd.f32 %v343, %v426
    %v428 = vpop.f32.mrf.mxu0
    %429 = vmatprep.mubr.f32.mxu0 0.0
    %430 = vmatmul.mubr.f32.gmra.mxu0 %v321
    %v431 = vpop.f32.mrf.mxu0
    %v432 = vadd.f32 %v343, %v431
    %v433 = vpop.f32.mrf.mxu0
    %434 = vdwg.mxu0
    %v435 = vld [vmem:[#allocation2] sm:$0xff]
    %v436 = vld [vmem:[#allocation2 + $0x8] sm:$0xff]
    %v437 = vld [vmem:[#allocation2 + $0x10] sm:$0xff]
    %v438 = vld [vmem:[#allocation2 + $0x18] sm:$0xff]
    %v439 = vld [vmem:[#allocation2 + $0x20] sm:$0xff]
    %440 = vmatprep.subr.mxu0 0.0
    %441 = vmatpush1.xpose.msra.mxu0 0.0
    %442 = vmatprep.subr.mxu0 0.0
    %443 = vmatpush1.xpose.msra.mxu0 0.0
    %444 = vmatprep.subr.mxu0 0.0
    %445 = vmatpush1.xpose.msra.mxu0 0.0
    %446 = vmatprep.subr.mxu0 0.0
    %447 = vmatpush1.xpose.msra.mxu0 0.0
    %448 = vmatprep.subr.mxu0 0.0
    %449 = vmatpush1.xpose.msra.mxu0 0.0
    %450 = vmatprep.subr.mxu0 0.0
    %451 = vmatpush1.xpose.msra.mxu0 0.0
    %452 = vmatprep.subr.mxu0 0.0
    %453 = vmatpush1.xpose.msra.mxu0 0.0
    %454 = vmatprep.subr.mxu0 0.0
    %455 = vmatpush1.xpose.msra.mxu0 0.0
    %456 = vmatprep.subr.mxu0 0.0
    %457 = vmatpush1.xpose.msra.mxu0 0.0
    %458 = vmatprep.subr.mxu0 0.0
    %459 = vmatpush1.xpose.msra.mxu0 0.0
    %460 = vmatprep.subr.mxu0 0.0
    %461 = vmatpush1.xpose.msra.mxu0 0.0
    %462 = vmatprep.subr.mxu0 0.0
    %463 = vmatpush1.xpose.msra.mxu0 %v439
    %464 = vmatprep.subr.mxu0 0.0
    %465 = vmatpush1.xpose.msra.mxu0 %v438
    %466 = vmatprep.subr.mxu0 0.0
    %467 = vmatpush1.xpose.msra.mxu0 %v437
    %468 = vmatprep.subr.mxu0 0.0
    %469 = vmatpush1.xpose.msra.mxu0 %v436
    %470 = vmatprep.subr.mxu0 0.0
    %471 = vmatpush1.xpose.msra.mxu0 %v435
    %472 = vmatprep.subr.mxu0 0.0
    %473 = vmatpush2.xpose.msra.mxu0 0.0
    %474 = vmatprep.subr.mxu0 0.0
    %475 = vmatpush2.xpose.msra.mxu0 0.0
    %476 = vmatprep.subr.mxu0 0.0
    %477 = vmatpush2.xpose.msra.mxu0 0.0
    %478 = vmatprep.subr.mxu0 0.0
    %479 = vmatpush2.xpose.msra.mxu0 0.0
    %480 = vmatprep.subr.mxu0 0.0
    %481 = vmatpush2.xpose.msra.mxu0 0.0
    %482 = vmatprep.subr.mxu0 0.0
    %483 = vmatpush2.xpose.msra.mxu0 0.0
    %484 = vmatprep.subr.mxu0 0.0
    %485 = vmatpush2.xpose.msra.mxu0 0.0
    %486 = vmatprep.subr.mxu0 0.0
    %487 = vmatpush2.xpose.msra.mxu0 0.0
    %488 = vmatprep.subr.mxu0 0.0
    %489 = vmatpush2.xpose.msra.mxu0 0.0
    %490 = vmatprep.subr.mxu0 0.0
    %491 = vmatpush2.xpose.msra.mxu0 0.0
    %492 = vmatprep.subr.mxu0 0.0
    %493 = vmatpush2.xpose.msra.mxu0 0.0
    %494 = vmatprep.subr.mxu0 0.0
    %495 = vmatpush2.xpose.msra.mxu0 0.0
    %496 = vmatprep.subr.mxu0 0.0
    %497 = vmatpush2.xpose.msra.mxu0 0.0
    %498 = vmatprep.subr.mxu0 0.0
    %499 = vmatpush2.xpose.msra.mxu0 0.0
    %500 = vmatprep.subr.mxu0 0.0
    %501 = vmatpush2.xpose.msra.mxu0 0.0
    %502 = vmatprep.subr.mxu0 0.0
    %503 = vmatpush2.xpose.msra.mxu0 0.0
    %504 = vmatprep.mubr.f32.mxu0 0.0
    %505 = vmatmul.mubr.f32.gmra.mxu0 %v412
    %v506 = vpop.f32.mrf.mxu0
    %v507 = vadd.f32 0.0, %v506
    %v508 = vpop.f32.mrf.mxu0
    %509 = vmatprep.mubr.f32.mxu0 0.0
    %510 = vmatmul.mubr.f32.gmra.mxu0 %v417
    %v511 = vpop.f32.mrf.mxu0
    %v512 = vadd.f32 0.0, %v511
    %v513 = vpop.f32.mrf.mxu0
    %514 = vmatprep.mubr.f32.mxu0 0.0
    %515 = vmatmul.mubr.f32.gmra.mxu0 %v422
    %v516 = vpop.f32.mrf.mxu0
    %v517 = vadd.f32 0.0, %v516
    %v518 = vpop.f32.mrf.mxu0
    %519 = vmatprep.mubr.f32.mxu0 0.0
    %520 = vmatmul.mubr.f32.gmra.mxu0 %v427
    %v521 = vpop.f32.mrf.mxu0
    %v522 = vadd.f32 0.0, %v521
    %v523 = vpop.f32.mrf.mxu0
    %524 = vmatprep.mubr.f32.mxu0 0.0
    %525 = vmatmul.mubr.f32.gmra.mxu0 %v432
    %v526 = vpop.f32.mrf.mxu0
    %v527 = vadd.f32 0.0, %v526
    %v528 = vpop.f32.mrf.mxu0
    %529 = vdwg.mxu0
    %vm530 = vcmask 326656
    %v531 = vsel %vm530, %v507, -inf
    %532 = vmax.xlane.f32.xlu0 %v531
    %v533 = vpop.xlane.xlu0 %532
    %v534 = vsel %vm530, %v512, -inf
    %535 = vmax.xlane.f32.xlu0 %v534
    %v536 = vpop.xlane.xlu0 %535
    %v537 = vsel %vm530, %v517, -inf
    %538 = vmax.xlane.f32.xlu0 %v537
    %v539 = vpop.xlane.xlu0 %538
    %v540 = vsel %vm530, %v522, -inf
    %541 = vmax.xlane.f32.xlu0 %v540
    %v542 = vpop.xlane.xlu0 %541
    %v543 = vsel %vm530, %v527, -inf
    %544 = vmax.xlane.f32.xlu0 %v543
    %v545 = vpop.xlane.xlu0 %544
    %v546 = vsub.f32 %v507, %v533
    %v547 = vsub.f32 %v512, %v536
    %v548 = vsub.f32 %v517, %v539
    %v549 = vsub.f32 %v522, %v542
    %v550 = vsub.f32 %v527, %v545
    %v551 = vmul.f32 %v546, 1.442695
    %v552 = vpow.pop %v551
    %v553 = vmul.f32 %v547, 1.442695
    %v554 = vpow.pop %v553
    %v555 = vmul.f32 %v548, 1.442695
    %v556 = vpow.pop %v555
    %v557 = vmul.f32 %v549, 1.442695
    %v558 = vpow.pop %v557
    %v559 = vmul.f32 %v550, 1.442695
    %v560 = vpow.pop %v559
    %v561 = vsel %vm530, %v552, 0.0
    %562 = vadd.xlane.f32.xlu0 %v561
    %v563 = vpop.xlane.xlu0 %562
    %v564 = vsel %vm530, %v554, 0.0
    %565 = vadd.xlane.f32.xlu0 %v564
    %v566 = vpop.xlane.xlu0 %565
    %v567 = vsel %vm530, %v556, 0.0
    %568 = vadd.xlane.f32.xlu0 %v567
    %v569 = vpop.xlane.xlu0 %568
    %v570 = vsel %vm530, %v558, 0.0
    %571 = vadd.xlane.f32.xlu0 %v570
    %v572 = vpop.xlane.xlu0 %571
    %v573 = vsel %vm530, %v560, 0.0
    %574 = vadd.xlane.f32.xlu0 %v573
    %v575 = vpop.xlane.xlu0 %574
    %v576 = vrcp.pop %v563
    %v577 = vmul.f32 %v552, %v576
    %v578 = vrcp.pop %v566
    %v579 = vmul.f32 %v554, %v578
    %v580 = vrcp.pop %v569
    %v581 = vmul.f32 %v556, %v580
    %v582 = vrcp.pop %v572
    %v583 = vmul.f32 %v558, %v582
    %v584 = vrcp.pop %v575
    %v585 = vmul.f32 %v560, %v584
    %v586 = vld [vmem:[#allocation3] sm:$0xff]
    %v587 = vld [vmem:[#allocation3 + $0x8] sm:$0xff]
    %v588 = vld [vmem:[#allocation3 + $0x10] sm:$0xff]
    %v589 = vld [vmem:[#allocation3 + $0x18] sm:$0xff]
    %v590 = vld [vmem:[#allocation3 + $0x20] sm:$0xff]
    %v592 = vsel %vm530, %v577, 0
    %v595 = vsel %vm530, %v579, 0
    %v598 = vsel %vm530, %v581, 0
    %v601 = vsel %vm530, %v583, 0
    %v604 = vsel %vm530, %v585, 0
    %606 = vmatprep.subr.mxu0 0.0
    %607 = vmatpush1.msra.mxu0 0.0
    %608 = vmatprep.subr.mxu0 0.0
    %609 = vmatpush1.msra.mxu0 0.0
    %610 = vmatprep.subr.mxu0 0.0
    %611 = vmatpush1.msra.mxu0 0.0
    %612 = vmatprep.subr.mxu0 0.0
    %613 = vmatpush1.msra.mxu0 0.0
    %614 = vmatprep.subr.mxu0 0.0
    %615 = vmatpush1.msra.mxu0 0.0
    %616 = vmatprep.subr.mxu0 0.0
    %617 = vmatpush1.msra.mxu0 0.0
    %618 = vmatprep.subr.mxu0 0.0
    %619 = vmatpush1.msra.mxu0 0.0
    %620 = vmatprep.subr.mxu0 0.0
    %621 = vmatpush1.msra.mxu0 0.0
    %622 = vmatprep.subr.mxu0 0.0
    %623 = vmatpush1.msra.mxu0 0.0
    %624 = vmatprep.subr.mxu0 0.0
    %625 = vmatpush1.msra.mxu0 0.0
    %626 = vmatprep.subr.mxu0 0.0
    %627 = vmatpush1.msra.mxu0 0.0
    %628 = vmatprep.subr.mxu0 0.0
    %629 = vmatpush1.msra.mxu0 %v590
    %630 = vmatprep.subr.mxu0 0.0
    %631 = vmatpush1.msra.mxu0 %v589
    %632 = vmatprep.subr.mxu0 0.0
    %633 = vmatpush1.msra.mxu0 %v588
    %634 = vmatprep.subr.mxu0 0.0
    %635 = vmatpush1.msra.mxu0 %v587
    %636 = vmatprep.subr.mxu0 0.0
    %637 = vmatpush1.msra.mxu0 %v586
    %638 = vmatprep.subr.mxu0 0.0
    %639 = vmatpush2.msra.mxu0 0.0
    %640 = vmatprep.subr.mxu0 0.0
    %641 = vmatpush2.msra.mxu0 0.0
    %642 = vmatprep.subr.mxu0 0.0
    %643 = vmatpush2.msra.mxu0 0.0
    %644 = vmatprep.subr.mxu0 0.0
    %645 = vmatpush2.msra.mxu0 0.0
    %646 = vmatprep.subr.mxu0 0.0
    %647 = vmatpush2.msra.mxu0 0.0
    %648 = vmatprep.subr.mxu0 0.0
    %649 = vmatpush2.msra.mxu0 0.0
    %650 = vmatprep.subr.mxu0 0.0
    %651 = vmatpush2.msra.mxu0 0.0
    %652 = vmatprep.subr.mxu0 0.0
    %653 = vmatpush2.msra.mxu0 0.0
    %654 = vmatprep.subr.mxu0 0.0
    %655 = vmatpush2.msra.mxu0 0.0
    %656 = vmatprep.subr.mxu0 0.0
    %657 = vmatpush2.msra.mxu0 0.0
    %658 = vmatprep.subr.mxu0 0.0
    %659 = vmatpush2.msra.mxu0 0.0
    %660 = vmatprep.subr.mxu0 0.0
    %661 = vmatpush2.msra.mxu0 0.0
    %662 = vmatprep.subr.mxu0 0.0
    %663 = vmatpush2.msra.mxu0 0.0
    %664 = vmatprep.subr.mxu0 0.0
    %665 = vmatpush2.msra.mxu0 0.0
    %666 = vmatprep.subr.mxu0 0.0
    %667 = vmatpush2.msra.mxu0 0.0
    %668 = vmatprep.subr.mxu0 0.0
    %669 = vmatpush2.msra.mxu0 0.0
    %670 = vmatprep.mubr.f32.mxu0 0.0
    %671 = vmatmul.mubr.f32.gmra.mxu0 %v592
    %v672 = vpop.f32.mrf.mxu0
    %v673 = vadd.f32 0.0, %v672
    %v674 = vpop.f32.mrf.mxu0
    %675 = vmatprep.mubr.f32.mxu0 0.0
    %676 = vmatmul.mubr.f32.gmra.mxu0 %v595
    %v677 = vpop.f32.mrf.mxu0
    %v678 = vadd.f32 0.0, %v677
    %v679 = vpop.f32.mrf.mxu0
    %680 = vmatprep.mubr.f32.mxu0 0.0
    %681 = vmatmul.mubr.f32.gmra.mxu0 %v598
    %v682 = vpop.f32.mrf.mxu0
    %v683 = vadd.f32 0.0, %v682
    %v684 = vpop.f32.mrf.mxu0
    %685 = vmatprep.mubr.f32.mxu0 0.0
    %686 = vmatmul.mubr.f32.gmra.mxu0 %v601
    %v687 = vpop.f32.mrf.mxu0
    %v688 = vadd.f32 0.0, %v687
    %v689 = vpop.f32.mrf.mxu0
    %690 = vmatprep.mubr.f32.mxu0 0.0
    %691 = vmatmul.mubr.f32.gmra.mxu0 %v604
    %v692 = vpop.f32.mrf.mxu0
    %v693 = vadd.f32 0.0, %v692
    %v694 = vpop.f32.mrf.mxu0
    %695 = vdwg.mxu0
    %v696 = vadd.f32 %v317, %v673
    %v697 = vadd.f32 %v318, %v678
    %v698 = vadd.f32 %v319, %v683
    %v699 = vadd.f32 %v320, %v688
    %v700 = vadd.f32 %v321, %v693
    %v701 = vld [vmem:[%s7] sm:$0xff]
    %v702 = vld [vmem:[%s7 + $0x8] sm:$0xff]
    %v703 = vld [vmem:[%s7 + $0x10] sm:$0xff]
    %v704 = vld [vmem:[%s7 + $0x18] sm:$0xff]
    %v705 = vld [vmem:[%s7 + $0x20] sm:$0xff]
    %v706 = vld [vmem:[%s7 + $0x28] sm:$0xff]
    %v707 = vld [vmem:[%s7 + $0x30] sm:$0xff]
    %v708 = vld [vmem:[%s7 + $0x38] sm:$0xff]
    %v709 = vld [vmem:[%s7 + $0x40] sm:$0xff]
    %v710 = vld [vmem:[%s7 + $0x48] sm:$0xff]
    %v711 = vld [vmem:[%s7 + $0x50] sm:$0xff]
    %v712 = vld [vmem:[%s7 + $0x58] sm:$0xff]
    %v713 = vld [vmem:[%s7 + $0x60] sm:$0xff]
    %v714 = vld [vmem:[%s7 + $0x68] sm:$0xff]
    %v715 = vld [vmem:[%s7 + $0x70] sm:$0xff]
    %v716 = vld [vmem:[%s7 + $0x78] sm:$0xff]
    %v717 = vld [vmem:[%s8] sm:$0x1]
    %v719 = vlaneseq
    %v720 = vshrl.u32 %v719, 7
    %v721 = vsub.s32 0, %v720
    %v722 = vrot.slane %v717, %v721
    %724 = vmatprep.subr.mxu0 0.0
    %725 = vmatpush1.msra.mxu0 %v716
    %726 = vmatprep.subr.mxu0 0.0
    %727 = vmatpush1.msra.mxu0 %v715
    %728 = vmatprep.subr.mxu0 0.0
    %729 = vmatpush1.msra.mxu0 %v714
    %730 = vmatprep.subr.mxu0 0.0
    %731 = vmatpush1.msra.mxu0 %v713
    %732 = vmatprep.subr.mxu0 0.0
    %733 = vmatpush1.msra.mxu0 %v712
    %734 = vmatprep.subr.mxu0 0.0
    %735 = vmatpush1.msra.mxu0 %v711
    %736 = vmatprep.subr.mxu0 0.0
    %737 = vmatpush1.msra.mxu0 %v710
    %738 = vmatprep.subr.mxu0 0.0
    %739 = vmatpush1.msra.mxu0 %v709
    %740 = vmatprep.subr.mxu0 0.0
    %741 = vmatpush1.msra.mxu0 %v708
    %742 = vmatprep.subr.mxu0 0.0
    %743 = vmatpush1.msra.mxu0 %v707
    %744 = vmatprep.subr.mxu0 0.0
    %745 = vmatpush1.msra.mxu0 %v706
    %746 = vmatprep.subr.mxu0 0.0
    %747 = vmatpush1.msra.mxu0 %v705
    %748 = vmatprep.subr.mxu0 0.0
    %749 = vmatpush1.msra.mxu0 %v704
    %750 = vmatprep.subr.mxu0 0.0
    %751 = vmatpush1.msra.mxu0 %v703
    %752 = vmatprep.subr.mxu0 0.0
    %753 = vmatpush1.msra.mxu0 %v702
    %754 = vmatprep.subr.mxu0 0.0
    %755 = vmatpush1.msra.mxu0 %v701
    %756 = vmatprep.subr.mxu0 0.0
    %757 = vmatpush2.msra.mxu0 0.0
    %758 = vmatprep.subr.mxu0 0.0
    %759 = vmatpush2.msra.mxu0 0.0
    %760 = vmatprep.subr.mxu0 0.0
    %761 = vmatpush2.msra.mxu0 0.0
    %762 = vmatprep.subr.mxu0 0.0
    %763 = vmatpush2.msra.mxu0 0.0
    %764 = vmatprep.subr.mxu0 0.0
    %765 = vmatpush2.msra.mxu0 0.0
    %766 = vmatprep.subr.mxu0 0.0
    %767 = vmatpush2.msra.mxu0 0.0
    %768 = vmatprep.subr.mxu0 0.0
    %769 = vmatpush2.msra.mxu0 0.0
    %770 = vmatprep.subr.mxu0 0.0
    %771 = vmatpush2.msra.mxu0 0.0
    %772 = vmatprep.subr.mxu0 0.0
    %773 = vmatpush2.msra.mxu0 0.0
    %774 = vmatprep.subr.mxu0 0.0
    %775 = vmatpush2.msra.mxu0 0.0
    %776 = vmatprep.subr.mxu0 0.0
    %777 = vmatpush2.msra.mxu0 0.0
    %778 = vmatprep.subr.mxu0 0.0
    %779 = vmatpush2.msra.mxu0 0.0
    %780 = vmatprep.subr.mxu0 0.0
    %781 = vmatpush2.msra.mxu0 0.0
    %782 = vmatprep.subr.mxu0 0.0
    %783 = vmatpush2.msra.mxu0 0.0
    %784 = vmatprep.subr.mxu0 0.0
    %785 = vmatpush2.msra.mxu0 0.0
    %786 = vmatprep.subr.mxu0 0.0
    %787 = vmatpush2.msra.mxu0 0.0
    %788 = vmatprep.mubr.f32.mxu0 0.0
    %789 = vmatmul.mubr.f32.gmra.mxu0 %v696
    %v790 = vpop.f32.mrf.mxu0
    %v791 = vadd.f32 %v722, %v790
    %v792 = vpop.f32.mrf.mxu0
    %793 = vmatprep.mubr.f32.mxu0 0.0
    %794 = vmatmul.mubr.f32.gmra.mxu0 %v697
    %v795 = vpop.f32.mrf.mxu0
    %v796 = vadd.f32 %v722, %v795
    %v797 = vpop.f32.mrf.mxu0
    %798 = vmatprep.mubr.f32.mxu0 0.0
    %799 = vmatmul.mubr.f32.gmra.mxu0 %v698
    %v800 = vpop.f32.mrf.mxu0
    %v801 = vadd.f32 %v722, %v800
    %v802 = vpop.f32.mrf.mxu0
    %803 = vmatprep.mubr.f32.mxu0 0.0
    %804 = vmatmul.mubr.f32.gmra.mxu0 %v699
    %v805 = vpop.f32.mrf.mxu0
    %v806 = vadd.f32 %v722, %v805
    %v807 = vpop.f32.mrf.mxu0
    %808 = vmatprep.mubr.f32.mxu0 0.0
    %809 = vmatmul.mubr.f32.gmra.mxu0 %v700
    %v810 = vpop.f32.mrf.mxu0
    %v811 = vadd.f32 %v722, %v810
    %v812 = vpop.f32.mrf.mxu0
    %813 = vdwg.mxu0
    %v814 = vmax.f32 %v791, 0.0
    %v815 = vmax.f32 %v796, 0.0
    %v816 = vmax.f32 %v801, 0.0
    %v817 = vmax.f32 %v806, 0.0
    %v818 = vmax.f32 %v811, 0.0
    %v819 = vld [vmem:[%s9] sm:$0xff]
    %v820 = vld [vmem:[%s9 + $0x8] sm:$0xff]
    %v821 = vld [vmem:[%s9 + $0x10] sm:$0xff]
    %v822 = vld [vmem:[%s9 + $0x18] sm:$0xff]
    %v823 = vld [vmem:[%s9 + $0x20] sm:$0xff]
    %v824 = vld [vmem:[%s9 + $0x28] sm:$0xff]
    %v825 = vld [vmem:[%s9 + $0x30] sm:$0xff]
    %v826 = vld [vmem:[%s9 + $0x38] sm:$0xff]
    %v827 = vld [vmem:[%s9 + $0x40] sm:$0xff]
    %v828 = vld [vmem:[%s9 + $0x48] sm:$0xff]
    %v829 = vld [vmem:[%s9 + $0x50] sm:$0xff]
    %v830 = vld [vmem:[%s9 + $0x58] sm:$0xff]
    %v831 = vld [vmem:[%s9 + $0x60] sm:$0xff]
    %v832 = vld [vmem:[%s9 + $0x68] sm:$0xff]
    %v833 = vld [vmem:[%s9 + $0x70] sm:$0xff]
    %v834 = vld [vmem:[%s9 + $0x78] sm:$0xff]
    %v835 = vld [vmem:[%s10] sm:$0x1]
    %v837 = vlaneseq
    %v838 = vshrl.u32 %v837, 7
    %v839 = vsub.s32 0, %v838
    %v840 = vrot.slane %v835, %v839
    %842 = vmatprep.subr.mxu0 0.0
    %843 = vmatpush1.msra.mxu0 %v834
    %844 = vmatprep.subr.mxu0 0.0
    %845 = vmatpush1.msra.mxu0 %v833
    %846 = vmatprep.subr.mxu0 0.0
    %847 = vmatpush1.msra.mxu0 %v832
    %848 = vmatprep.subr.mxu0 0.0
    %849 = vmatpush1.msra.mxu0 %v831
    %850 = vmatprep.subr.mxu0 0.0
    %851 = vmatpush1.msra.mxu0 %v830
    %852 = vmatprep.subr.mxu0 0.0
    %853 = vmatpush1.msra.mxu0 %v829
    %854 = vmatprep.subr.mxu0 0.0
    %855 = vmatpush1.msra.mxu0 %v828
    %856 = vmatprep.subr.mxu0 0.0
    %857 = vmatpush1.msra.mxu0 %v827
    %858 = vmatprep.subr.mxu0 0.0
    %859 = vmatpush1.msra.mxu0 %v826
    %860 = vmatprep.subr.mxu0 0.0
    %861 = vmatpush1.msra.mxu0 %v825
    %862 = vmatprep.subr.mxu0 0.0
    %863 = vmatpush1.msra.mxu0 %v824
    %864 = vmatprep.subr.mxu0 0.0
    %865 = vmatpush1.msra.mxu0 %v823
    %866 = vmatprep.subr.mxu0 0.0
    %867 = vmatpush1.msra.mxu0 %v822
    %868 = vmatprep.subr.mxu0 0.0
    %869 = vmatpush1.msra.mxu0 %v821
    %870 = vmatprep.subr.mxu0 0.0
    %871 = vmatpush1.msra.mxu0 %v820
    %872 = vmatprep.subr.mxu0 0.0
    %873 = vmatpush1.msra.mxu0 %v819
    %874 = vmatprep.subr.mxu0 0.0
    %875 = vmatpush2.msra.mxu0 0.0
    %876 = vmatprep.subr.mxu0 0.0
    %877 = vmatpush2.msra.mxu0 0.0
    %878 = vmatprep.subr.mxu0 0.0
    %879 = vmatpush2.msra.mxu0 0.0
    %880 = vmatprep.subr.mxu0 0.0
    %881 = vmatpush2.msra.mxu0 0.0
    %882 = vmatprep.subr.mxu0 0.0
    %883 = vmatpush2.msra.mxu0 0.0
    %884 = vmatprep.subr.mxu0 0.0
    %885 = vmatpush2.msra.mxu0 0.0
    %886 = vmatprep.subr.mxu0 0.0
    %887 = vmatpush2.msra.mxu0 0.0
    %888 = vmatprep.subr.mxu0 0.0
    %889 = vmatpush2.msra.mxu0 0.0
    %890 = vmatprep.subr.mxu0 0.0
    %891 = vmatpush2.msra.mxu0 0.0
    %892 = vmatprep.subr.mxu0 0.0
    %893 = vmatpush2.msra.mxu0 0.0
    %894 = vmatprep.subr.mxu0 0.0
    %895 = vmatpush2.msra.mxu0 0.0
    %896 = vmatprep.subr.mxu0 0.0
    %897 = vmatpush2.msra.mxu0 0.0
    %898 = vmatprep.subr.mxu0 0.0
    %899 = vmatpush2.msra.mxu0 0.0
    %900 = vmatprep.subr.mxu0 0.0
    %901 = vmatpush2.msra.mxu0 0.0
    %902 = vmatprep.subr.mxu0 0.0
    %903 = vmatpush2.msra.mxu0 0.0
    %904 = vmatprep.subr.mxu0 0.0
    %905 = vmatpush2.msra.mxu0 0.0
    %906 = vmatprep.mubr.f32.mxu0 0.0
    %907 = vmatmul.mubr.f32.gmra.mxu0 %v814
    %v908 = vpop.f32.mrf.mxu0
    %v909 = vadd.f32 %v840, %v908
    %v910 = vpop.f32.mrf.mxu0
    %911 = vmatprep.mubr.f32.mxu0 0.0
    %912 = vmatmul.mubr.f32.gmra.mxu0 %v815
    %v913 = vpop.f32.mrf.mxu0
    %v914 = vadd.f32 %v840, %v913
    %v915 = vpop.f32.mrf.mxu0
    %916 = vmatprep.mubr.f32.mxu0 0.0
    %917 = vmatmul.mubr.f32.gmra.mxu0 %v816
    %v918 = vpop.f32.mrf.mxu0
    %v919 = vadd.f32 %v840, %v918
    %v920 = vpop.f32.mrf.mxu0
    %921 = vmatprep.mubr.f32.mxu0 0.0
    %922 = vmatmul.mubr.f32.gmra.mxu0 %v817
    %v923 = vpop.f32.mrf.mxu0
    %v924 = vadd.f32 %v840, %v923
    %v925 = vpop.f32.mrf.mxu0
    %926 = vmatprep.mubr.f32.mxu0 0.0
    %927 = vmatmul.mubr.f32.gmra.mxu0 %v818
    %v928 = vpop.f32.mrf.mxu0
    %v929 = vadd.f32 %v840, %v928
    %v930 = vpop.f32.mrf.mxu0
    %931 = vdwg.mxu0
    %932 = vst.msk [vmem:[#allocation4] sm:$0xff] %vm530, %v577
    %933 = vst.msk [vmem:[#allocation4 + $0x8] sm:$0xff] %vm530, %v579
    %934 = vst.msk [vmem:[#allocation4 + $0x10] sm:$0xff] %vm530, %v581
    %935 = vst.msk [vmem:[#allocation4 + $0x18] sm:$0xff] %vm530, %v583
    %936 = vst.msk [vmem:[#allocation4 + $0x20] sm:$0xff] %vm530, %v585
    %v937 = vadd.f32 %v909, %v696
    %v938 = vadd.f32 %v914, %v697
    %v939 = vadd.f32 %v919, %v698
    %v940 = vadd.f32 %v924, %v699
    %v941 = vadd.f32 %v929, %v700
    %942 = vst [vmem:[%s13] sm:$0xff] %v937
    %943 = vst [vmem:[%s13 + $0x8] sm:$0xff] %v938
    %944 = vst [vmem:[%s13 + $0x10] sm:$0xff] %v939
    %945 = vst [vmem:[%s13 + $0x18] sm:$0xff] %v940
    %946 = vst [vmem:[%s13 + $0x20] sm:$0xff] %v941
    // Predicated region
    $region54: #{transformer_layer.1} parent=1 // pred_check
      _
    $region55: #{transformer_layer.1} parent=1 // pred_check_branch
      %948 = sbr.rel (0) target = $region57
    $region56: #{transformer_layer.1} parent=1 // pred_region
      %s950 = ssub.s32 640, 640
      %951 = vsyncadd [#allocation5], %s950
      %s952 = sshll.u32 [#allocation4], 4
      %s953 = int_to_ptr.vmem [resolvable:$true] %s952
      %958 = dma.vmem_to_hbm [thread:$0]  %s953, 640, %s12, [#allocation5], 128, 128, 8
    $region57: #{transformer_layer.1} parent=1 // pred_fallthru
      _
    // Predicated region
    $region58: #{transformer_layer.1} parent=1 // pred_check
      _
    $region59: #{transformer_layer.1} parent=1 // pred_check_branch
      %960 = sbr.rel (0) target = $region61
    $region60: #{transformer_layer.1} parent=1 // pred_region
      _
    $region61: #{transformer_layer.1} parent=1 // pred_fallthru
      _
    // Predicated region
    $region62: #{transformer_layer.1} parent=1 // pred_check
      _
    $region63: #{transformer_layer.1} parent=1 // pred_check_branch
      %962 = sbr.rel (0) target = $region65
    $region64: #{transformer_layer.1} parent=1 // pred_region
      %963 = dma.done [#allocation5], 640
    $region65: #{transformer_layer.1} parent=1 // pred_fallthru
      _
    // Predicated region
    $region66: #{transformer_layer.1} parent=1 // pred_check
      _
    $region67: #{transformer_layer.1} parent=1 // pred_check_branch
      %965 = sbr.rel (0) target = $region69
    $region68: #{transformer_layer.1} parent=1 // pred_region
      _
    $region69: #{transformer_layer.1} parent=1 // pred_fallthru
      _
    %966 = vsyncpa [#allocation5], 1

// kernel: transformer_layer.1
$region0: #{transformer_layer.1}
  #allocation0 [shape = 'u32[]', space=smem, size = 0x4, offset = 0x4, fixed_abs, tag = 'smem constant byte address 0x4 - core index']
  #allocation1 [shape = 'u32[144,128]{1,0:T(1,128)}', space=vmem, size = 0x12000, scoped, tag = 'internal scratch']
  #allocation2 [shape = 'f32[40,128]{1,0:T(8,128)}', space=vmem, size = 0x5000, scoped, tag = 'scratch operand']
  #allocation3 [shape = 'f32[40,128]{1,0:T(8,128)}', space=vmem, size = 0x5000, scoped, tag = 'scratch operand']
  %s0 = inlined_call_operand.vmem [shape: f32[40,128], index: 0, kind: input, shape index: {}]
  %s1 = inlined_call_operand.vmem [shape: f32[128,128], index: 1, kind: input, shape index: {}]
  %s2 = inlined_call_operand.vmem [shape: f32[1,128], index: 2, kind: input, shape index: {}]
  %s3 = inlined_call_operand.vmem [shape: f32[128,256], index: 3, kind: input, shape index: {}]
  %s4 = inlined_call_operand.vmem [shape: f32[1,256], index: 4, kind: input, shape index: {}]
  %s5 = inlined_call_operand.vmem [shape: f32[128,128], index: 5, kind: input, shape index: {}]
  %s6 = inlined_call_operand.vmem [shape: f32[1,128], index: 6, kind: input, shape index: {}]
  %s7 = inlined_call_operand.vmem [shape: f32[128,128], index: 7, kind: input, shape index: {}]
  %s8 = inlined_call_operand.vmem [shape: f32[1,128], index: 8, kind: input, shape index: {}]
  %s9 = inlined_call_operand.vmem [shape: f32[128,128], index: 9, kind: input, shape index: {}]
  %s10 = inlined_call_operand.vmem [shape: f32[1,128], index: 10, kind: input, shape index: {}]
  %s11 = inlined_call_operand.vmem [shape: f32[1,40], index: 11, kind: input, shape index: {}]
  %s12 = inlined_call_operand.hbm [shape: f32[40,40], index: 12, kind: output, shape index: {0}]
  %s13 = inlined_call_operand.vmem [shape: f32[40,128], index: 13, kind: output, shape index: {1}]
  %14 = xla_tuple %s12, %s13
  %s15 = sld [smem:[#allocation0]]
  $region70: #{transformer_layer.1} parent=0
    _
  %s17 = ssub.s32 1, %s15
  %s18 = scalar_select 0, %s17, %s15
  $region1: #{transformer_layer.1} parent=0
    #allocation4 [shape = 'u8[20480]{0}', space=vmem, size = 0x5000, scoped, tag = 'output window, operand 0, single buffered']
    #allocation5 [shape = 's32[1]{0}', space=sflag, size = 0x4, scoped, tag = 'scoped memory for transformer_layer.1']
    %19 = vsyncpa [#allocation5], 0
    // Predicated region
    $region2: #{transformer_layer.1} parent=1 // pred_check
      _
    $region3: #{transformer_layer.1} parent=1 // pred_check_branch
      %21 = sbr.rel (0) target = $region5
    $region4: #{transformer_layer.1} parent=1 // pred_region
      _
    $region5: #{transformer_layer.1} parent=1 // pred_fallthru
      _
    // Predicated region
    $region6: #{transformer_layer.1} parent=1 // pred_check
      _
    $region7: #{transformer_layer.1} parent=1 // pred_check_branch
      %23 = sbr.rel (0) target = $region9
    $region8: #{transformer_layer.1} parent=1 // pred_region
      _
    $region9: #{transformer_layer.1} parent=1 // pred_fallthru
      _
    // Predicated region
    $region10: #{transformer_layer.1} parent=1 // pred_check
      _
    $region11: #{transformer_layer.1} parent=1 // pred_check_branch
      %25 = sbr.rel (0) target = $region13
    $region12: #{transformer_layer.1} parent=1 // pred_region
      _
    $region13: #{transformer_layer.1} parent=1 // pred_fallthru
      _
    // Predicated region
    $region14: #{transformer_layer.1} parent=1 // pred_check
      _
    $region15: #{transformer_layer.1} parent=1 // pred_check_branch
      %27 = sbr.rel (0) target = $region17
    $region16: #{transformer_layer.1} parent=1 // pred_region
      _
    $region17: #{transformer_layer.1} parent=1 // pred_fallthru
      _
    // Predicated region
    $region18: #{transformer_layer.1} parent=1 // pred_check
      _
    $region19: #{transformer_layer.1} parent=1 // pred_check_branch
      %29 = sbr.rel (0) target = $region21
    $region20: #{transformer_layer.1} parent=1 // pred_region
      _
    $region21: #{transformer_layer.1} parent=1 // pred_fallthru
      _
    // Predicated region
    $region22: #{transformer_layer.1} parent=1 // pred_check
      _
    $region23: #{transformer_layer.1} parent=1 // pred_check_branch
      %31 = sbr.rel (0) target = $region25
    $region24: #{transformer_layer.1} parent=1 // pred_region
      _
    $region25: #{transformer_layer.1} parent=1 // pred_fallthru
      _
    // Predicated region
    $region26: #{transformer_layer.1} parent=1 // pred_check
      _
    $region27: #{transformer_layer.1} parent=1 // pred_check_branch
      %33 = sbr.rel (0) target = $region29
    $region28: #{transformer_layer.1} parent=1 // pred_region
      _
    $region29: #{transformer_layer.1} parent=1 // pred_fallthru
      _
    // Predicated region
    $region30: #{transformer_layer.1} parent=1 // pred_check
      _
    $region31: #{transformer_layer.1} parent=1 // pred_check_branch
      %35 = sbr.rel (0) target = $region33
    $region32: #{transformer_layer.1} parent=1 // pred_region
      _
    $region33: #{transformer_layer.1} parent=1 // pred_fallthru
      _
    // Predicated region
    $region34: #{transformer_layer.1} parent=1 // pred_check
      _
    $region35: #{transformer_layer.1} parent=1 // pred_check_branch
      %37 = sbr.rel (0) target = $region37
    $region36: #{transformer_layer.1} parent=1 // pred_region
      _
    $region37: #{transformer_layer.1} parent=1 // pred_fallthru
      _
    // Predicated region
    $region38: #{transformer_layer.1} parent=1 // pred_check
      _
    $region39: #{transformer_layer.1} parent=1 // pred_check_branch
      %39 = sbr.rel (0) target = $region41
    $region40: #{transformer_layer.1} parent=1 // pred_region
      _
    $region41: #{transformer_layer.1} parent=1 // pred_fallthru
      _
    // Predicated region
    $region42: #{transformer_layer.1} parent=1 // pred_check
      _
    $region43: #{transformer_layer.1} parent=1 // pred_check_branch
      %41 = sbr.rel (0) target = $region45
    $region44: #{transformer_layer.1} parent=1 // pred_region
      _
    $region45: #{transformer_layer.1} parent=1 // pred_fallthru
      _
    // Predicated region
    $region46: #{transformer_layer.1} parent=1 // pred_check
      _
    $region47: #{transformer_layer.1} parent=1 // pred_check_branch
      %43 = sbr.rel (0) target = $region49
    $region48: #{transformer_layer.1} parent=1 // pred_region
      _
    $region49: #{transformer_layer.1} parent=1 // pred_fallthru
      _
    %p44 = scmp.eq.s32.totalorder 0, 0
    // Predicated region
    $region50: #{transformer_layer.1} parent=1 // pred_check
      %p45 = pneg %p44
    $region51: #{transformer_layer.1} parent=1 // pred_check_branch
      %47 = sbr.rel (%p45) target = $region53
    $region52: #{transformer_layer.1} parent=1 // pred_region
      %v48 = vld [vmem:[%s0] sm:$0xff]
      %v49 = vld [vmem:[%s0 + $0x8] sm:$0xff]
      %v50 = vld [vmem:[%s0 + $0x10] sm:$0xff]
      %v51 = vld [vmem:[%s0 + $0x18] sm:$0xff]
      %v52 = vld [vmem:[%s0 + $0x20] sm:$0xff]
      %v53 = vld [vmem:[%s3] sm:$0xff]
      %v54 = vld [vmem:[%s3 + $0x8] sm:$0xff]
      %v55 = vld [vmem:[%s3 + $0x10] sm:$0xff]
      %v56 = vld [vmem:[%s3 + $0x18] sm:$0xff]
      %v57 = vld [vmem:[%s3 + $0x20] sm:$0xff]
      %v58 = vld [vmem:[%s3 + $0x28] sm:$0xff]
      %v59 = vld [vmem:[%s3 + $0x30] sm:$0xff]
      %v60 = vld [vmem:[%s3 + $0x38] sm:$0xff]
      %v61 = vld [vmem:[%s3 + $0x40] sm:$0xff]
      %v62 = vld [vmem:[%s3 + $0x48] sm:$0xff]
      %v63 = vld [vmem:[%s3 + $0x50] sm:$0xff]
      %v64 = vld [vmem:[%s3 + $0x58] sm:$0xff]
      %v65 = vld [vmem:[%s3 + $0x60] sm:$0xff]
      %v66 = vld [vmem:[%s3 + $0x68] sm:$0xff]
      %v67 = vld [vmem:[%s3 + $0x70] sm:$0xff]
      %v68 = vld [vmem:[%s3 + $0x78] sm:$0xff]
      %v69 = vld [vmem:[%s3 + $0x80] sm:$0xff]
      %v70 = vld [vmem:[%s3 + $0x88] sm:$0xff]
      %v71 = vld [vmem:[%s3 + $0x90] sm:$0xff]
      %v72 = vld [vmem:[%s3 + $0x98] sm:$0xff]
      %v73 = vld [vmem:[%s3 + $0xa0] sm:$0xff]
      %v74 = vld [vmem:[%s3 + $0xa8] sm:$0xff]
      %v75 = vld [vmem:[%s3 + $0xb0] sm:$0xff]
      %v76 = vld [vmem:[%s3 + $0xb8] sm:$0xff]
      %v77 = vld [vmem:[%s3 + $0xc0] sm:$0xff]
      %v78 = vld [vmem:[%s3 + $0xc8] sm:$0xff]
      %v79 = vld [vmem:[%s3 + $0xd0] sm:$0xff]
      %v80 = vld [vmem:[%s3 + $0xd8] sm:$0xff]
      %v81 = vld [vmem:[%s3 + $0xe0] sm:$0xff]
      %v82 = vld [vmem:[%s3 + $0xe8] sm:$0xff]
      %v83 = vld [vmem:[%s3 + $0xf0] sm:$0xff]
      %v84 = vld [vmem:[%s3 + $0xf8] sm:$0xff]
      %v85 = vld [vmem:[%s4] sm:$0x3]
      %v87 = vlaneseq
      %v88 = vshrl.u32 %v87, 7
      %v89 = vsub.s32 0, %v88
      %v90 = vrot.slane %v85, %v89
      %v91 = vlaneseq
      %v92 = vshrl.u32 %v91, 7
      %v93 = vsub.s32 1, %v92
      %v94 = vrot.slane %v85, %v93
      %97 = vmatprep.subr.mxu0 %v84
      %98 = vmatpush1.msra.mxu0 %v83
      %99 = vmatprep.subr.mxu0 %v82
      %100 = vmatpush1.msra.mxu0 %v81
      %101 = vmatprep.subr.mxu0 %v80
      %102 = vmatpush1.msra.mxu0 %v79
      %103 = vmatprep.subr.mxu0 %v78
      %104 = vmatpush1.msra.mxu0 %v77
      %105 = vmatprep.subr.mxu0 %v76
      %106 = vmatpush1.msra.mxu0 %v75
      %107 = vmatprep.subr.mxu0 %v74
      %108 = vmatpush1.msra.mxu0 %v73
      %109 = vmatprep.subr.mxu0 %v72
      %110 = vmatpush1.msra.mxu0 %v71
      %111 = vmatprep.subr.mxu0 %v70
      %112 = vmatpush1.msra.mxu0 %v69
      %113 = vmatprep.subr.mxu0 %v68
      %114 = vmatpush1.msra.mxu0 %v67
      %115 = vmatprep.subr.mxu0 %v66
      %116 = vmatpush1.msra.mxu0 %v65
      %117 = vmatprep.subr.mxu0 %v64
      %118 = vmatpush1.msra.mxu0 %v63
      %119 = vmatprep.subr.mxu0 %v62
      %120 = vmatpush1.msra.mxu0 %v61
      %121 = vmatprep.subr.mxu0 %v60
      %122 = vmatpush1.msra.mxu0 %v59
      %123 = vmatprep.subr.mxu0 %v58
      %124 = vmatpush1.msra.mxu0 %v57
      %125 = vmatprep.subr.mxu0 %v56
      %126 = vmatpush1.msra.mxu0 %v55
      %127 = vmatprep.subr.mxu0 %v54
      %128 = vmatpush1.msra.mxu0 %v53
      %129 = vmatprep.subr.mxu0 0.0
      %130 = vmatpush2.msra.mxu0 0.0
      %131 = vmatprep.subr.mxu0 0.0
      %132 = vmatpush2.msra.mxu0 0.0
      %133 = vmatprep.subr.mxu0 0.0
      %134 = vmatpush2.msra.mxu0 0.0
      %135 = vmatprep.subr.mxu0 0.0
      %136 = vmatpush2.msra.mxu0 0.0
      %137 = vmatprep.subr.mxu0 0.0
      %138 = vmatpush2.msra.mxu0 0.0
      %139 = vmatprep.subr.mxu0 0.0
      %140 = vmatpush2.msra.mxu0 0.0
      %141 = vmatprep.subr.mxu0 0.0
      %142 = vmatpush2.msra.mxu0 0.0
      %143 = vmatprep.subr.mxu0 0.0
      %144 = vmatpush2.msra.mxu0 0.0
      %145 = vmatprep.subr.mxu0 0.0
      %146 = vmatpush2.msra.mxu0 0.0
      %147 = vmatprep.subr.mxu0 0.0
      %148 = vmatpush2.msra.mxu0 0.0
      %149 = vmatprep.subr.mxu0 0.0
      %150 = vmatpush2.msra.mxu0 0.0
      %151 = vmatprep.subr.mxu0 0.0
      %152 = vmatpush2.msra.mxu0 0.0
      %153 = vmatprep.subr.mxu0 0.0
      %154 = vmatpush2.msra.mxu0 0.0
      %155 = vmatprep.subr.mxu0 0.0
      %156 = vmatpush2.msra.mxu0 0.0
      %157 = vmatprep.subr.mxu0 0.0
      %158 = vmatpush2.msra.mxu0 0.0
      %159 = vmatprep.subr.mxu0 0.0
      %160 = vmatpush2.msra.mxu0 0.0
      %161 = vmatprep.mubr.f32.mxu0 0.0
      %162 = vmatmul.mubr.f32.gmra.mxu0 %v48
      %v163 = vpop.f32.mrf.mxu0
      %v164 = vadd.f32 %v90, %v163
      %v165 = vpop.f32.mrf.mxu0
      %v166 = vadd.f32 %v94, %v165
      %167 = vmatprep.mubr.f32.mxu0 0.0
      %168 = vmatmul.mubr.f32.gmra.mxu0 %v49
      %v169 = vpop.f32.mrf.mxu0
      %v170 = vadd.f32 %v90, %v169
      %v171 = vpop.f32.mrf.mxu0
      %v172 = vadd.f32 %v94, %v171
      %173 = vmatprep.mubr.f32.mxu0 0.0
      %174 = vmatmul.mubr.f32.gmra.mxu0 %v50
      %v175 = vpop.f32.mrf.mxu0
      %v176 = vadd.f32 %v90, %v175
      %v177 = vpop.f32.mrf.mxu0
      %v178 = vadd.f32 %v94, %v177
      %179 = vmatprep.mubr.f32.mxu0 0.0
      %180 = vmatmul.mubr.f32.gmra.mxu0 %v51
      %v181 = vpop.f32.mrf.mxu0
      %v182 = vadd.f32 %v90, %v181
      %v183 = vpop.f32.mrf.mxu0
      %v184 = vadd.f32 %v94, %v183
      %185 = vmatprep.mubr.f32.mxu0 0.0
      %186 = vmatmul.mubr.f32.gmra.mxu0 %v52
      %v187 = vpop.f32.mrf.mxu0
      %v188 = vadd.f32 %v90, %v187
      %v189 = vpop.f32.mrf.mxu0
      %v190 = vadd.f32 %v94, %v189
      %191 = vdwg.mxu0
      %v192 = vld [vmem:[%s5] sm:$0xff]
      %v193 = vld [vmem:[%s5 + $0x8] sm:$0xff]
      %v194 = vld [vmem:[%s5 + $0x10] sm:$0xff]
      %v195 = vld [vmem:[%s5 + $0x18] sm:$0xff]
      %v196 = vld [vmem:[%s5 + $0x20] sm:$0xff]
      %v197 = vld [vmem:[%s5 + $0x28] sm:$0xff]
      %v198 = vld [vmem:[%s5 + $0x30] sm:$0xff]
      %v199 = vld [vmem:[%s5 + $0x38] sm:$0xff]
      %v200 = vld [vmem:[%s5 + $0x40] sm:$0xff]
      %v201 = vld [vmem:[%s5 + $0x48] sm:$0xff]
      %v202 = vld [vmem:[%s5 + $0x50] sm:$0xff]
      %v203 = vld [vmem:[%s5 + $0x58] sm:$0xff]
      %v204 = vld [vmem:[%s5 + $0x60] sm:$0xff]
      %v205 = vld [vmem:[%s5 + $0x68] sm:$0xff]
      %v206 = vld [vmem:[%s5 + $0x70] sm:$0xff]
      %v207 = vld [vmem:[%s5 + $0x78] sm:$0xff]
      %v208 = vld [vmem:[%s6] sm:$0x1]
      %v210 = vlaneseq
      %v211 = vshrl.u32 %v210, 7
      %v212 = vsub.s32 0, %v211
      %v213 = vrot.slane %v208, %v212
      %215 = vmatprep.subr.mxu0 0.0
      %216 = vmatpush1.msra.mxu0 %v207
      %217 = vmatprep.subr.mxu0 0.0
      %218 = vmatpush1.msra.mxu0 %v206
      %219 = vmatprep.subr.mxu0 0.0
      %220 = vmatpush1.msra.mxu0 %v205
      %221 = vmatprep.subr.mxu0 0.0
      %222 = vmatpush1.msra.mxu0 %v204
      %223 = vmatprep.subr.mxu0 0.0
      %224 = vmatpush1.msra.mxu0 %v203
      %225 = vmatprep.subr.mxu0 0.0
      %226 = vmatpush1.msra.mxu0 %v202
      %227 = vmatprep.subr.mxu0 0.0
      %228 = vmatpush1.msra.mxu0 %v201
      %229 = vmatprep.subr.mxu0 0.0
      %230 = vmatpush1.msra.mxu0 %v200
      %231 = vmatprep.subr.mxu0 0.0
      %232 = vmatpush1.msra.mxu0 %v199
      %233 = vmatprep.subr.mxu0 0.0
      %234 = vmatpush1.msra.mxu0 %v198
      %235 = vmatprep.subr.mxu0 0.0
      %236 = vmatpush1.msra.mxu0 %v197
      %237 = vmatprep.subr.mxu0 0.0
      %238 = vmatpush1.msra.mxu0 %v196
      %239 = vmatprep.subr.mxu0 0.0
      %240 = vmatpush1.msra.mxu0 %v195
      %241 = vmatprep.subr.mxu0 0.0
      %242 = vmatpush1.msra.mxu0 %v194
      %243 = vmatprep.subr.mxu0 0.0
      %244 = vmatpush1.msra.mxu0 %v193
      %245 = vmatprep.subr.mxu0 0.0
      %246 = vmatpush1.msra.mxu0 %v192
      %247 = vmatprep.subr.mxu0 0.0
      %248 = vmatpush2.msra.mxu0 0.0
      %249 = vmatprep.subr.mxu0 0.0
      %250 = vmatpush2.msra.mxu0 0.0
      %251 = vmatprep.subr.mxu0 0.0
      %252 = vmatpush2.msra.mxu0 0.0
      %253 = vmatprep.subr.mxu0 0.0
      %254 = vmatpush2.msra.mxu0 0.0
      %255 = vmatprep.subr.mxu0 0.0
      %256 = vmatpush2.msra.mxu0 0.0
      %257 = vmatprep.subr.mxu0 0.0
      %258 = vmatpush2.msra.mxu0 0.0
      %259 = vmatprep.subr.mxu0 0.0
      %260 = vmatpush2.msra.mxu0 0.0
      %261 = vmatprep.subr.mxu0 0.0
      %262 = vmatpush2.msra.mxu0 0.0
      %263 = vmatprep.subr.mxu0 0.0
      %264 = vmatpush2.msra.mxu0 0.0
      %265 = vmatprep.subr.mxu0 0.0
      %266 = vmatpush2.msra.mxu0 0.0
      %267 = vmatprep.subr.mxu0 0.0
      %268 = vmatpush2.msra.mxu0 0.0
      %269 = vmatprep.subr.mxu0 0.0
      %270 = vmatpush2.msra.mxu0 0.0
      %271 = vmatprep.subr.mxu0 0.0
      %272 = vmatpush2.msra.mxu0 0.0
      %273 = vmatprep.subr.mxu0 0.0
      %274 = vmatpush2.msra.mxu0 0.0
      %275 = vmatprep.subr.mxu0 0.0
      %276 = vmatpush2.msra.mxu0 0.0
      %277 = vmatprep.subr.mxu0 0.0
      %278 = vmatpush2.msra.mxu0 0.0
      %279 = vmatprep.mubr.f32.mxu0 0.0
      %280 = vmatmul.mubr.f32.gmra.mxu0 %v166
      %v281 = vpop.f32.mrf.mxu0
      %v282 = vadd.f32 %v213, %v281
      %v283 = vpop.f32.mrf.mxu0
      %284 = vmatprep.mubr.f32.mxu0 0.0
      %285 = vmatmul.mubr.f32.gmra.mxu0 %v172
      %v286 = vpop.f32.mrf.mxu0
      %v287 = vadd.f32 %v213, %v286
      %v288 = vpop.f32.mrf.mxu0
      %289 = vmatprep.mubr.f32.mxu0 0.0
      %290 = vmatmul.mubr.f32.gmra.mxu0 %v178
      %v291 = vpop.f32.mrf.mxu0
      %v292 = vadd.f32 %v213, %v291
      %v293 = vpop.f32.mrf.mxu0
      %294 = vmatprep.mubr.f32.mxu0 0.0
      %295 = vmatmul.mubr.f32.gmra.mxu0 %v184
      %v296 = vpop.f32.mrf.mxu0
      %v297 = vadd.f32 %v213, %v296
      %v298 = vpop.f32.mrf.mxu0
      %299 = vmatprep.mubr.f32.mxu0 0.0
      %300 = vmatmul.mubr.f32.gmra.mxu0 %v190
      %v301 = vpop.f32.mrf.mxu0
      %v302 = vadd.f32 %v213, %v301
      %v303 = vpop.f32.mrf.mxu0
      %304 = vdwg.mxu0
      %305 = vst [vmem:[#allocation2] sm:$0xff] %v164
      %306 = vst [vmem:[#allocation2 + $0x8] sm:$0xff] %v170
      %307 = vst [vmem:[#allocation2 + $0x10] sm:$0xff] %v176
      %308 = vst [vmem:[#allocation2 + $0x18] sm:$0xff] %v182
      %309 = vst [vmem:[#allocation2 + $0x20] sm:$0xff] %v188
      %310 = vst [vmem:[#allocation3] sm:$0xff] %v282
      %311 = vst [vmem:[#allocation3 + $0x8] sm:$0xff] %v287
      %312 = vst [vmem:[#allocation3 + $0x10] sm:$0xff] %v292
      %313 = vst [vmem:[#allocation3 + $0x18] sm:$0xff] %v297
      %314 = vst [vmem:[#allocation3 + $0x20] sm:$0xff] %v302
    $region53: #{transformer_layer.1} parent=1 // pred_fallthru
      _
    %s315 = smul.u32 0, 40
    %s316 = scalar_lea.vmem %s0, %s315
    %v317 = vld [vmem:[%s316] sm:$0xff]
    %v318 = vld [vmem:[%s316 + $0x8] sm:$0xff]
    %v319 = vld [vmem:[%s316 + $0x10] sm:$0xff]
    %v320 = vld [vmem:[%s316 + $0x18] sm:$0xff]
    %v321 = vld [vmem:[%s316 + $0x20] sm:$0xff]
    %v322 = vld [vmem:[%s1] sm:$0xff]
    %v323 = vld [vmem:[%s1 + $0x8] sm:$0xff]
    %v324 = vld [vmem:[%s1 + $0x10] sm:$0xff]
    %v325 = vld [vmem:[%s1 + $0x18] sm:$0xff]
    %v326 = vld [vmem:[%s1 + $0x20] sm:$0xff]
    %v327 = vld [vmem:[%s1 + $0x28] sm:$0xff]
    %v328 = vld [vmem:[%s1 + $0x30] sm:$0xff]
    %v329 = vld [vmem:[%s1 + $0x38] sm:$0xff]
    %v330 = vld [vmem:[%s1 + $0x40] sm:$0xff]
    %v331 = vld [vmem:[%s1 + $0x48] sm:$0xff]
    %v332 = vld [vmem:[%s1 + $0x50] sm:$0xff]
    %v333 = vld [vmem:[%s1 + $0x58] sm:$0xff]
    %v334 = vld [vmem:[%s1 + $0x60] sm:$0xff]
    %v335 = vld [vmem:[%s1 + $0x68] sm:$0xff]
    %v336 = vld [vmem:[%s1 + $0x70] sm:$0xff]
    %v337 = vld [vmem:[%s1 + $0x78] sm:$0xff]
    %v338 = vld [vmem:[%s2] sm:$0x1]
    %v340 = vlaneseq
    %v341 = vshrl.u32 %v340, 7
    %v342 = vsub.s32 0, %v341
    %v343 = vrot.slane %v338, %v342
    %345 = vmatprep.subr.mxu0 0.0
    %346 = vmatpush1.msra.mxu0 %v337
    %347 = vmatprep.subr.mxu0 0.0
    %348 = vmatpush1.msra.mxu0 %v336
    %349 = vmatprep.subr.mxu0 0.0
    %350 = vmatpush1.msra.mxu0 %v335
    %351 = vmatprep.subr.mxu0 0.0
    %352 = vmatpush1.msra.mxu0 %v334
    %353 = vmatprep.subr.mxu0 0.0
    %354 = vmatpush1.msra.mxu0 %v333
    %355 = vmatprep.subr.mxu0 0.0
    %356 = vmatpush1.msra.mxu0 %v332
    %357 = vmatprep.subr.mxu0 0.0
    %358 = vmatpush1.msra.mxu0 %v331
    %359 = vmatprep.subr.mxu0 0.0
    %360 = vmatpush1.msra.mxu0 %v330
    %361 = vmatprep.subr.mxu0 0.0
    %362 = vmatpush1.msra.mxu0 %v329
    %363 = vmatprep.subr.mxu0 0.0
    %364 = vmatpush1.msra.mxu0 %v328
    %365 = vmatprep.subr.mxu0 0.0
    %366 = vmatpush1.msra.mxu0 %v327
    %367 = vmatprep.subr.mxu0 0.0
    %368 = vmatpush1.msra.mxu0 %v326
    %369 = vmatprep.subr.mxu0 0.0
    %370 = vmatpush1.msra.mxu0 %v325
    %371 = vmatprep.subr.mxu0 0.0
    %372 = vmatpush1.msra.mxu0 %v324
    %373 = vmatprep.subr.mxu0 0.0
    %374 = vmatpush1.msra.mxu0 %v323
    %375 = vmatprep.subr.mxu0 0.0
    %376 = vmatpush1.msra.mxu0 %v322
    %377 = vmatprep.subr.mxu0 0.0
    %378 = vmatpush2.msra.mxu0 0.0
    %379 = vmatprep.subr.mxu0 0.0
    %380 = vmatpush2.msra.mxu0 0.0
    %381 = vmatprep.subr.mxu0 0.0
    %382 = vmatpush2.msra.mxu0 0.0
    %383 = vmatprep.subr.mxu0 0.0
    %384 = vmatpush2.msra.mxu0 0.0
    %385 = vmatprep.subr.mxu0 0.0
    %386 = vmatpush2.msra.mxu0 0.0
    %387 = vmatprep.subr.mxu0 0.0
    %388 = vmatpush2.msra.mxu0 0.0
    %389 = vmatprep.subr.mxu0 0.0
    %390 = vmatpush2.msra.mxu0 0.0
    %391 = vmatprep.subr.mxu0 0.0
    %392 = vmatpush2.msra.mxu0 0.0
    %393 = vmatprep.subr.mxu0 0.0
    %394 = vmatpush2.msra.mxu0 0.0
    %395 = vmatprep.subr.mxu0 0.0
    %396 = vmatpush2.msra.mxu0 0.0
    %397 = vmatprep.subr.mxu0 0.0
    %398 = vmatpush2.msra.mxu0 0.0
    %399 = vmatprep.subr.mxu0 0.0
    %400 = vmatpush2.msra.mxu0 0.0
    %401 = vmatprep.subr.mxu0 0.0
    %402 = vmatpush2.msra.mxu0 0.0
    %403 = vmatprep.subr.mxu0 0.0
    %404 = vmatpush2.msra.mxu0 0.0
    %405 = vmatprep.subr.mxu0 0.0
    %406 = vmatpush2.msra.mxu0 0.0
    %407 = vmatprep.subr.mxu0 0.0
    %408 = vmatpush2.msra.mxu0 0.0
    %409 = vmatprep.mubr.f32.mxu0 0.0
    %410 = vmatmul.mubr.f32.gmra.mxu0 %v317
    %v411 = vpop.f32.mrf.mxu0
    %v412 = vadd.f32 %v343, %v411
    %v413 = vpop.f32.mrf.mxu0
    %414 = vmatprep.mubr.f32.mxu0 0.0
    %415 = vmatmul.mubr.f32.gmra.mxu0 %v318
    %v416 = vpop.f32.mrf.mxu0
    %v417 = vadd.f32 %v343, %v416
    %v418 = vpop.f32.mrf.mxu0
    %419 = vmatprep.mubr.f32.mxu0 0.0
    %420 = vmatmul.mubr.f32.gmra.mxu0 %v319
    %v421 = vpop.f32.mrf.mxu0
    %v422 = vadd.f32 %v343, %v421
    %v423 = vpop.f32.mrf.mxu0
    %424 = vmatprep.mubr.f32.mxu0 0.0
    %425 = vmatmul.mubr.f32.gmra.mxu0 %v320
    %v426 = vpop.f32.mrf.mxu0
    %v427 = vadd.f32 %v343, %v426
    %v428 = vpop.f32.mrf.mxu0
    %429 = vmatprep.mubr.f32.mxu0 0.0
    %430 = vmatmul.mubr.f32.gmra.mxu0 %v321
    %v431 = vpop.f32.mrf.mxu0
    %v432 = vadd.f32 %v343, %v431
    %v433 = vpop.f32.mrf.mxu0
    %434 = vdwg.mxu0
    %v435 = vld [vmem:[#allocation2] sm:$0xff]
    %v436 = vld [vmem:[#allocation2 + $0x8] sm:$0xff]
    %v437 = vld [vmem:[#allocation2 + $0x10] sm:$0xff]
    %v438 = vld [vmem:[#allocation2 + $0x18] sm:$0xff]
    %v439 = vld [vmem:[#allocation2 + $0x20] sm:$0xff]
    %440 = vmatprep.subr.mxu0 0.0
    %441 = vmatpush1.xpose.msra.mxu0 0.0
    %442 = vmatprep.subr.mxu0 0.0
    %443 = vmatpush1.xpose.msra.mxu0 0.0
    %444 = vmatprep.subr.mxu0 0.0
    %445 = vmatpush1.xpose.msra.mxu0 0.0
    %446 = vmatprep.subr.mxu0 0.0
    %447 = vmatpush1.xpose.msra.mxu0 0.0
    %448 = vmatprep.subr.mxu0 0.0
    %449 = vmatpush1.xpose.msra.mxu0 0.0
    %450 = vmatprep.subr.mxu0 0.0
    %451 = vmatpush1.xpose.msra.mxu0 0.0
    %452 = vmatprep.subr.mxu0 0.0
    %453 = vmatpush1.xpose.msra.mxu0 0.0
    %454 = vmatprep.subr.mxu0 0.0
    %455 = vmatpush1.xpose.msra.mxu0 0.0
    %456 = vmatprep.subr.mxu0 0.0
    %457 = vmatpush1.xpose.msra.mxu0 0.0
    %458 = vmatprep.subr.mxu0 0.0
    %459 = vmatpush1.xpose.msra.mxu0 0.0
    %460 = vmatprep.subr.mxu0 0.0
    %461 = vmatpush1.xpose.msra.mxu0 0.0
    %462 = vmatprep.subr.mxu0 0.0
    %463 = vmatpush1.xpose.msra.mxu0 %v439
    %464 = vmatprep.subr.mxu0 0.0
    %465 = vmatpush1.xpose.msra.mxu0 %v438
    %466 = vmatprep.subr.mxu0 0.0
    %467 = vmatpush1.xpose.msra.mxu0 %v437
    %468 = vmatprep.subr.mxu0 0.0
    %469 = vmatpush1.xpose.msra.mxu0 %v436
    %470 = vmatprep.subr.mxu0 0.0
    %471 = vmatpush1.xpose.msra.mxu0 %v435
    %472 = vmatprep.subr.mxu0 0.0
    %473 = vmatpush2.xpose.msra.mxu0 0.0
    %474 = vmatprep.subr.mxu0 0.0
    %475 = vmatpush2.xpose.msra.mxu0 0.0
    %476 = vmatprep.subr.mxu0 0.0
    %477 = vmatpush2.xpose.msra.mxu0 0.0
    %478 = vmatprep.subr.mxu0 0.0
    %479 = vmatpush2.xpose.msra.mxu0 0.0
    %480 = vmatprep.subr.mxu0 0.0
    %481 = vmatpush2.xpose.msra.mxu0 0.0
    %482 = vmatprep.subr.mxu0 0.0
    %483 = vmatpush2.xpose.msra.mxu0 0.0
    %484 = vmatprep.subr.mxu0 0.0
    %485 = vmatpush2.xpose.msra.mxu0 0.0
    %486 = vmatprep.subr.mxu0 0.0
    %487 = vmatpush2.xpose.msra.mxu0 0.0
    %488 = vmatprep.subr.mxu0 0.0
    %489 = vmatpush2.xpose.msra.mxu0 0.0
    %490 = vmatprep.subr.mxu0 0.0
    %491 = vmatpush2.xpose.msra.mxu0 0.0
    %492 = vmatprep.subr.mxu0 0.0
    %493 = vmatpush2.xpose.msra.mxu0 0.0
    %494 = vmatprep.subr.mxu0 0.0
    %495 = vmatpush2.xpose.msra.mxu0 0.0
    %496 = vmatprep.subr.mxu0 0.0
    %497 = vmatpush2.xpose.msra.mxu0 0.0
    %498 = vmatprep.subr.mxu0 0.0
    %499 = vmatpush2.xpose.msra.mxu0 0.0
    %500 = vmatprep.subr.mxu0 0.0
    %501 = vmatpush2.xpose.msra.mxu0 0.0
    %502 = vmatprep.subr.mxu0 0.0
    %503 = vmatpush2.xpose.msra.mxu0 0.0
    %504 = vmatprep.mubr.f32.mxu0 0.0
    %505 = vmatmul.mubr.f32.gmra.mxu0 %v412
    %v506 = vpop.f32.mrf.mxu0
    %v507 = vadd.f32 0.0, %v506
    %v508 = vpop.f32.mrf.mxu0
    %509 = vmatprep.mubr.f32.mxu0 0.0
    %510 = vmatmul.mubr.f32.gmra.mxu0 %v417
    %v511 = vpop.f32.mrf.mxu0
    %v512 = vadd.f32 0.0, %v511
    %v513 = vpop.f32.mrf.mxu0
    %514 = vmatprep.mubr.f32.mxu0 0.0
    %515 = vmatmul.mubr.f32.gmra.mxu0 %v422
    %v516 = vpop.f32.mrf.mxu0
    %v517 = vadd.f32 0.0, %v516
    %v518 = vpop.f32.mrf.mxu0
    %519 = vmatprep.mubr.f32.mxu0 0.0
    %520 = vmatmul.mubr.f32.gmra.mxu0 %v427
    %v521 = vpop.f32.mrf.mxu0
    %v522 = vadd.f32 0.0, %v521
    %v523 = vpop.f32.mrf.mxu0
    %524 = vmatprep.mubr.f32.mxu0 0.0
    %525 = vmatmul.mubr.f32.gmra.mxu0 %v432
    %v526 = vpop.f32.mrf.mxu0
    %v527 = vadd.f32 0.0, %v526
    %v528 = vpop.f32.mrf.mxu0
    %529 = vdwg.mxu0
    %vm530 = vcmask 326656
    %v531 = vsel %vm530, %v507, -inf
    %532 = vmax.xlane.f32.xlu0 %v531
    %v533 = vpop.xlane.xlu0 %532
    %v534 = vsel %vm530, %v512, -inf
    %535 = vmax.xlane.f32.xlu0 %v534
    %v536 = vpop.xlane.xlu0 %535
    %v537 = vsel %vm530, %v517, -inf
    %538 = vmax.xlane.f32.xlu0 %v537
    %v539 = vpop.xlane.xlu0 %538
    %v540 = vsel %vm530, %v522, -inf
    %541 = vmax.xlane.f32.xlu0 %v540
    %v542 = vpop.xlane.xlu0 %541
    %v543 = vsel %vm530, %v527, -inf
    %544 = vmax.xlane.f32.xlu0 %v543
    %v545 = vpop.xlane.xlu0 %544
    %v546 = vsub.f32 %v507, %v533
    %v547 = vsub.f32 %v512, %v536
    %v548 = vsub.f32 %v517, %v539
    %v549 = vsub.f32 %v522, %v542
    %v550 = vsub.f32 %v527, %v545
    %v551 = vmul.f32 %v546, 1.442695
    %v552 = vpow.pop %v551
    %v553 = vmul.f32 %v547, 1.442695
    %v554 = vpow.pop %v553
    %v555 = vmul.f32 %v548, 1.442695
    %v556 = vpow.pop %v555
    %v557 = vmul.f32 %v549, 1.442695
    %v558 = vpow.pop %v557
    %v559 = vmul.f32 %v550, 1.442695
    %v560 = vpow.pop %v559
    %v561 = vsel %vm530, %v552, 0.0
    %562 = vadd.xlane.f32.xlu0 %v561
    %v563 = vpop.xlane.xlu0 %562
    %v564 = vsel %vm530, %v554, 0.0
    %565 = vadd.xlane.f32.xlu0 %v564
    %v566 = vpop.xlane.xlu0 %565
    %v567 = vsel %vm530, %v556, 0.0
    %568 = vadd.xlane.f32.xlu0 %v567
    %v569 = vpop.xlane.xlu0 %568
    %v570 = vsel %vm530, %v558, 0.0
    %571 = vadd.xlane.f32.xlu0 %v570
    %v572 = vpop.xlane.xlu0 %571
    %v573 = vsel %vm530, %v560, 0.0
    %574 = vadd.xlane.f32.xlu0 %v573
    %v575 = vpop.xlane.xlu0 %574
    %v576 = vrcp.pop %v563
    %v577 = vmul.f32 %v552, %v576
    %v578 = vrcp.pop %v566
    %v579 = vmul.f32 %v554, %v578
    %v580 = vrcp.pop %v569
    %v581 = vmul.f32 %v556, %v580
    %v582 = vrcp.pop %v572
    %v583 = vmul.f32 %v558, %v582
    %v584 = vrcp.pop %v575
    %v585 = vmul.f32 %v560, %v584
    %v586 = vld [vmem:[#allocation3] sm:$0xff]
    %v587 = vld [vmem:[#allocation3 + $0x8] sm:$0xff]
    %v588 = vld [vmem:[#allocation3 + $0x10] sm:$0xff]
    %v589 = vld [vmem:[#allocation3 + $0x18] sm:$0xff]
    %v590 = vld [vmem:[#allocation3 + $0x20] sm:$0xff]
    %v592 = vsel %vm530, %v577, 0
    %v595 = vsel %vm530, %v579, 0
    %v598 = vsel %vm530, %v581, 0
    %v601 = vsel %vm530, %v583, 0
    %v604 = vsel %vm530, %v585, 0
    %606 = vmatprep.subr.mxu0 0.0
    %607 = vmatpush1.msra.mxu0 0.0
    %608 = vmatprep.subr.mxu0 0.0
    %609 = vmatpush1.msra.mxu0 0.0
    %610 = vmatprep.subr.mxu0 0.0
    %611 = vmatpush1.msra.mxu0 0.0
    %612 = vmatprep.subr.mxu0 0.0
    %613 = vmatpush1.msra.mxu0 0.0
    %614 = vmatprep.subr.mxu0 0.0
    %615 = vmatpush1.msra.mxu0 0.0
    %616 = vmatprep.subr.mxu0 0.0
    %617 = vmatpush1.msra.mxu0 0.0
    %618 = vmatprep.subr.mxu0 0.0
    %619 = vmatpush1.msra.mxu0 0.0
    %620 = vmatprep.subr.mxu0 0.0
    %621 = vmatpush1.msra.mxu0 0.0
    %622 = vmatprep.subr.mxu0 0.0
    %623 = vmatpush1.msra.mxu0 0.0
    %624 = vmatprep.subr.mxu0 0.0
    %625 = vmatpush1.msra.mxu0 0.0
    %626 = vmatprep.subr.mxu0 0.0
    %627 = vmatpush1.msra.mxu0 0.0
    %628 = vmatprep.subr.mxu0 0.0
    %629 = vmatpush1.msra.mxu0 %v590
    %630 = vmatprep.subr.mxu0 0.0
    %631 = vmatpush1.msra.mxu0 %v589
    %632 = vmatprep.subr.mxu0 0.0
    %633 = vmatpush1.msra.mxu0 %v588
    %634 = vmatprep.subr.mxu0 0.0
    %635 = vmatpush1.msra.mxu0 %v587
    %636 = vmatprep.subr.mxu0 0.0
    %637 = vmatpush1.msra.mxu0 %v586
    %638 = vmatprep.subr.mxu0 0.0
    %639 = vmatpush2.msra.mxu0 0.0
    %640 = vmatprep.subr.mxu0 0.0
    %641 = vmatpush2.msra.mxu0 0.0
    %642 = vmatprep.subr.mxu0 0.0
    %643 = vmatpush2.msra.mxu0 0.0
    %644 = vmatprep.subr.mxu0 0.0
    %645 = vmatpush2.msra.mxu0 0.0
    %646 = vmatprep.subr.mxu0 0.0
    %647 = vmatpush2.msra.mxu0 0.0
    %648 = vmatprep.subr.mxu0 0.0
    %649 = vmatpush2.msra.mxu0 0.0
    %650 = vmatprep.subr.mxu0 0.0
    %651 = vmatpush2.msra.mxu0 0.0
    %652 = vmatprep.subr.mxu0 0.0
    %653 = vmatpush2.msra.mxu0 0.0
    %654 = vmatprep.subr.mxu0 0.0
    %655 = vmatpush2.msra.mxu0 0.0
    %656 = vmatprep.subr.mxu0 0.0
    %657 = vmatpush2.msra.mxu0 0.0
    %658 = vmatprep.subr.mxu0 0.0
    %659 = vmatpush2.msra.mxu0 0.0
    %660 = vmatprep.subr.mxu0 0.0
    %661 = vmatpush2.msra.mxu0 0.0
    %662 = vmatprep.subr.mxu0 0.0
    %663 = vmatpush2.msra.mxu0 0.0
    %664 = vmatprep.subr.mxu0 0.0
    %665 = vmatpush2.msra.mxu0 0.0
    %666 = vmatprep.subr.mxu0 0.0
    %667 = vmatpush2.msra.mxu0 0.0
    %668 = vmatprep.subr.mxu0 0.0
    %669 = vmatpush2.msra.mxu0 0.0
    %670 = vmatprep.mubr.f32.mxu0 0.0
    %671 = vmatmul.mubr.f32.gmra.mxu0 %v592
    %v672 = vpop.f32.mrf.mxu0
    %v673 = vadd.f32 0.0, %v672
    %v674 = vpop.f32.mrf.mxu0
    %675 = vmatprep.mubr.f32.mxu0 0.0
    %676 = vmatmul.mubr.f32.gmra.mxu0 %v595
    %v677 = vpop.f32.mrf.mxu0
    %v678 = vadd.f32 0.0, %v677
    %v679 = vpop.f32.mrf.mxu0
    %680 = vmatprep.mubr.f32.mxu0 0.0
    %681 = vmatmul.mubr.f32.gmra.mxu0 %v598
    %v682 = vpop.f32.mrf.mxu0
    %v683 = vadd.f32 0.0, %v682
    %v684 = vpop.f32.mrf.mxu0
    %685 = vmatprep.mubr.f32.mxu0 0.0
    %686 = vmatmul.mubr.f32.gmra.mxu0 %v601
    %v687 = vpop.f32.mrf.mxu0
    %v688 = vadd.f32 0.0, %v687
    %v689 = vpop.f32.mrf.mxu0
    %690 = vmatprep.mubr.f32.mxu0 0.0
    %691 = vmatmul.mubr.f32.gmra.mxu0 %v604
    %v692 = vpop.f32.mrf.mxu0
    %v693 = vadd.f32 0.0, %v692
    %v694 = vpop.f32.mrf.mxu0
    %695 = vdwg.mxu0
    %v696 = vadd.f32 %v317, %v673
    %v697 = vadd.f32 %v318, %v678
    %v698 = vadd.f32 %v319, %v683
    %v699 = vadd.f32 %v320, %v688
    %v700 = vadd.f32 %v321, %v693
    %v701 = vld [vmem:[%s7] sm:$0xff]
    %v702 = vld [vmem:[%s7 + $0x8] sm:$0xff]
    %v703 = vld [vmem:[%s7 + $0x10] sm:$0xff]
    %v704 = vld [vmem:[%s7 + $0x18] sm:$0xff]
    %v705 = vld [vmem:[%s7 + $0x20] sm:$0xff]
    %v706 = vld [vmem:[%s7 + $0x28] sm:$0xff]
    %v707 = vld [vmem:[%s7 + $0x30] sm:$0xff]
    %v708 = vld [vmem:[%s7 + $0x38] sm:$0xff]
    %v709 = vld [vmem:[%s7 + $0x40] sm:$0xff]
    %v710 = vld [vmem:[%s7 + $0x48] sm:$0xff]
    %v711 = vld [vmem:[%s7 + $0x50] sm:$0xff]
    %v712 = vld [vmem:[%s7 + $0x58] sm:$0xff]
    %v713 = vld [vmem:[%s7 + $0x60] sm:$0xff]
    %v714 = vld [vmem:[%s7 + $0x68] sm:$0xff]
    %v715 = vld [vmem:[%s7 + $0x70] sm:$0xff]
    %v716 = vld [vmem:[%s7 + $0x78] sm:$0xff]
    %v717 = vld [vmem:[%s8] sm:$0x1]
    %v719 = vlaneseq
    %v720 = vshrl.u32 %v719, 7
    %v721 = vsub.s32 0, %v720
    %v722 = vrot.slane %v717, %v721
    %724 = vmatprep.subr.mxu0 0.0
    %725 = vmatpush1.msra.mxu0 %v716
    %726 = vmatprep.subr.mxu0 0.0
    %727 = vmatpush1.msra.mxu0 %v715
    %728 = vmatprep.subr.mxu0 0.0
    %729 = vmatpush1.msra.mxu0 %v714
    %730 = vmatprep.subr.mxu0 0.0
    %731 = vmatpush1.msra.mxu0 %v713
    %732 = vmatprep.subr.mxu0 0.0
    %733 = vmatpush1.msra.mxu0 %v712
    %734 = vmatprep.subr.mxu0 0.0
    %735 = vmatpush1.msra.mxu0 %v711
    %736 = vmatprep.subr.mxu0 0.0
    %737 = vmatpush1.msra.mxu0 %v710
    %738 = vmatprep.subr.mxu0 0.0
    %739 = vmatpush1.msra.mxu0 %v709
    %740 = vmatprep.subr.mxu0 0.0
    %741 = vmatpush1.msra.mxu0 %v708
    %742 = vmatprep.subr.mxu0 0.0
    %743 = vmatpush1.msra.mxu0 %v707
    %744 = vmatprep.subr.mxu0 0.0
    %745 = vmatpush1.msra.mxu0 %v706
    %746 = vmatprep.subr.mxu0 0.0
    %747 = vmatpush1.msra.mxu0 %v705
    %748 = vmatprep.subr.mxu0 0.0
    %749 = vmatpush1.msra.mxu0 %v704
    %750 = vmatprep.subr.mxu0 0.0
    %751 = vmatpush1.msra.mxu0 %v703
    %752 = vmatprep.subr.mxu0 0.0
    %753 = vmatpush1.msra.mxu0 %v702
    %754 = vmatprep.subr.mxu0 0.0
    %755 = vmatpush1.msra.mxu0 %v701
    %756 = vmatprep.subr.mxu0 0.0
    %757 = vmatpush2.msra.mxu0 0.0
    %758 = vmatprep.subr.mxu0 0.0
    %759 = vmatpush2.msra.mxu0 0.0
    %760 = vmatprep.subr.mxu0 0.0
    %761 = vmatpush2.msra.mxu0 0.0
    %762 = vmatprep.subr.mxu0 0.0
    %763 = vmatpush2.msra.mxu0 0.0
    %764 = vmatprep.subr.mxu0 0.0
    %765 = vmatpush2.msra.mxu0 0.0
    %766 = vmatprep.subr.mxu0 0.0
    %767 = vmatpush2.msra.mxu0 0.0
    %768 = vmatprep.subr.mxu0 0.0
    %769 = vmatpush2.msra.mxu0 0.0
    %770 = vmatprep.subr.mxu0 0.0
    %771 = vmatpush2.msra.mxu0 0.0
    %772 = vmatprep.subr.mxu0 0.0
    %773 = vmatpush2.msra.mxu0 0.0
    %774 = vmatprep.subr.mxu0 0.0
    %775 = vmatpush2.msra.mxu0 0.0
    %776 = vmatprep.subr.mxu0 0.0
    %777 = vmatpush2.msra.mxu0 0.0
    %778 = vmatprep.subr.mxu0 0.0
    %779 = vmatpush2.msra.mxu0 0.0
    %780 = vmatprep.subr.mxu0 0.0
    %781 = vmatpush2.msra.mxu0 0.0
    %782 = vmatprep.subr.mxu0 0.0
    %783 = vmatpush2.msra.mxu0 0.0
    %784 = vmatprep.subr.mxu0 0.0
    %785 = vmatpush2.msra.mxu0 0.0
    %786 = vmatprep.subr.mxu0 0.0
    %787 = vmatpush2.msra.mxu0 0.0
    %788 = vmatprep.mubr.f32.mxu0 0.0
    %789 = vmatmul.mubr.f32.gmra.mxu0 %v696
    %v790 = vpop.f32.mrf.mxu0
    %v791 = vadd.f32 %v722, %v790
    %v792 = vpop.f32.mrf.mxu0
    %793 = vmatprep.mubr.f32.mxu0 0.0
    %794 = vmatmul.mubr.f32.gmra.mxu0 %v697
    %v795 = vpop.f32.mrf.mxu0
    %v796 = vadd.f32 %v722, %v795
    %v797 = vpop.f32.mrf.mxu0
    %798 = vmatprep.mubr.f32.mxu0 0.0
    %799 = vmatmul.mubr.f32.gmra.mxu0 %v698
    %v800 = vpop.f32.mrf.mxu0
    %v801 = vadd.f32 %v722, %v800
    %v802 = vpop.f32.mrf.mxu0
    %803 = vmatprep.mubr.f32.mxu0 0.0
    %804 = vmatmul.mubr.f32.gmra.mxu0 %v699
    %v805 = vpop.f32.mrf.mxu0
    %v806 = vadd.f32 %v722, %v805
    %v807 = vpop.f32.mrf.mxu0
    %808 = vmatprep.mubr.f32.mxu0 0.0
    %809 = vmatmul.mubr.f32.gmra.mxu0 %v700
    %v810 = vpop.f32.mrf.mxu0
    %v811 = vadd.f32 %v722, %v810
    %v812 = vpop.f32.mrf.mxu0
    %813 = vdwg.mxu0
    %v814 = vmax.f32 %v791, 0.0
    %v815 = vmax.f32 %v796, 0.0
    %v816 = vmax.f32 %v801, 0.0
    %v817 = vmax.f32 %v806, 0.0
    %v818 = vmax.f32 %v811, 0.0
    %v819 = vld [vmem:[%s9] sm:$0xff]
    %v820 = vld [vmem:[%s9 + $0x8] sm:$0xff]
    %v821 = vld [vmem:[%s9 + $0x10] sm:$0xff]
    %v822 = vld [vmem:[%s9 + $0x18] sm:$0xff]
    %v823 = vld [vmem:[%s9 + $0x20] sm:$0xff]
    %v824 = vld [vmem:[%s9 + $0x28] sm:$0xff]
    %v825 = vld [vmem:[%s9 + $0x30] sm:$0xff]
    %v826 = vld [vmem:[%s9 + $0x38] sm:$0xff]
    %v827 = vld [vmem:[%s9 + $0x40] sm:$0xff]
    %v828 = vld [vmem:[%s9 + $0x48] sm:$0xff]
    %v829 = vld [vmem:[%s9 + $0x50] sm:$0xff]
    %v830 = vld [vmem:[%s9 + $0x58] sm:$0xff]
    %v831 = vld [vmem:[%s9 + $0x60] sm:$0xff]
    %v832 = vld [vmem:[%s9 + $0x68] sm:$0xff]
    %v833 = vld [vmem:[%s9 + $0x70] sm:$0xff]
    %v834 = vld [vmem:[%s9 + $0x78] sm:$0xff]
    %v835 = vld [vmem:[%s10] sm:$0x1]
    %v837 = vlaneseq
    %v838 = vshrl.u32 %v837, 7
    %v839 = vsub.s32 0, %v838
    %v840 = vrot.slane %v835, %v839
    %842 = vmatprep.subr.mxu0 0.0
    %843 = vmatpush1.msra.mxu0 %v834
    %844 = vmatprep.subr.mxu0 0.0
    %845 = vmatpush1.msra.mxu0 %v833
    %846 = vmatprep.subr.mxu0 0.0
    %847 = vmatpush1.msra.mxu0 %v832
    %848 = vmatprep.subr.mxu0 0.0
    %849 = vmatpush1.msra.mxu0 %v831
    %850 = vmatprep.subr.mxu0 0.0
    %851 = vmatpush1.msra.mxu0 %v830
    %852 = vmatprep.subr.mxu0 0.0
    %853 = vmatpush1.msra.mxu0 %v829
    %854 = vmatprep.subr.mxu0 0.0
    %855 = vmatpush1.msra.mxu0 %v828
    %856 = vmatprep.subr.mxu0 0.0
    %857 = vmatpush1.msra.mxu0 %v827
    %858 = vmatprep.subr.mxu0 0.0
    %859 = vmatpush1.msra.mxu0 %v826
    %860 = vmatprep.subr.mxu0 0.0
    %861 = vmatpush1.msra.mxu0 %v825
    %862 = vmatprep.subr.mxu0 0.0
    %863 = vmatpush1.msra.mxu0 %v824
    %864 = vmatprep.subr.mxu0 0.0
    %865 = vmatpush1.msra.mxu0 %v823
    %866 = vmatprep.subr.mxu0 0.0
    %867 = vmatpush1.msra.mxu0 %v822
    %868 = vmatprep.subr.mxu0 0.0
    %869 = vmatpush1.msra.mxu0 %v821
    %870 = vmatprep.subr.mxu0 0.0
    %871 = vmatpush1.msra.mxu0 %v820
    %872 = vmatprep.subr.mxu0 0.0
    %873 = vmatpush1.msra.mxu0 %v819
    %874 = vmatprep.subr.mxu0 0.0
    %875 = vmatpush2.msra.mxu0 0.0
    %876 = vmatprep.subr.mxu0 0.0
    %877 = vmatpush2.msra.mxu0 0.0
    %878 = vmatprep.subr.mxu0 0.0
    %879 = vmatpush2.msra.mxu0 0.0
    %880 = vmatprep.subr.mxu0 0.0
    %881 = vmatpush2.msra.mxu0 0.0
    %882 = vmatprep.subr.mxu0 0.0
    %883 = vmatpush2.msra.mxu0 0.0
    %884 = vmatprep.subr.mxu0 0.0
    %885 = vmatpush2.msra.mxu0 0.0
    %886 = vmatprep.subr.mxu0 0.0
    %887 = vmatpush2.msra.mxu0 0.0
    %888 = vmatprep.subr.mxu0 0.0
    %889 = vmatpush2.msra.mxu0 0.0
    %890 = vmatprep.subr.mxu0 0.0
    %891 = vmatpush2.msra.mxu0 0.0
    %892 = vmatprep.subr.mxu0 0.0
    %893 = vmatpush2.msra.mxu0 0.0
    %894 = vmatprep.subr.mxu0 0.0
    %895 = vmatpush2.msra.mxu0 0.0
    %896 = vmatprep.subr.mxu0 0.0
    %897 = vmatpush2.msra.mxu0 0.0
    %898 = vmatprep.subr.mxu0 0.0
    %899 = vmatpush2.msra.mxu0 0.0
    %900 = vmatprep.subr.mxu0 0.0
    %901 = vmatpush2.msra.mxu0 0.0
    %902 = vmatprep.subr.mxu0 0.0
    %903 = vmatpush2.msra.mxu0 0.0
    %904 = vmatprep.subr.mxu0 0.0
    %905 = vmatpush2.msra.mxu0 0.0
    %906 = vmatprep.mubr.f32.mxu0 0.0
    %907 = vmatmul.mubr.f32.gmra.mxu0 %v814
    %v908 = vpop.f32.mrf.mxu0
    %v909 = vadd.f32 %v840, %v908
    %v910 = vpop.f32.mrf.mxu0
    %911 = vmatprep.mubr.f32.mxu0 0.0
    %912 = vmatmul.mubr.f32.gmra.mxu0 %v815
    %v913 = vpop.f32.mrf.mxu0
    %v914 = vadd.f32 %v840, %v913
    %v915 = vpop.f32.mrf.mxu0
    %916 = vmatprep.mubr.f32.mxu0 0.0
    %917 = vmatmul.mubr.f32.gmra.mxu0 %v816
    %v918 = vpop.f32.mrf.mxu0
    %v919 = vadd.f32 %v840, %v918
    %v920 = vpop.f32.mrf.mxu0
    %921 = vmatprep.mubr.f32.mxu0 0.0
    %922 = vmatmul.mubr.f32.gmra.mxu0 %v817
    %v923 = vpop.f32.mrf.mxu0
    %v924 = vadd.f32 %v840, %v923
    %v925 = vpop.f32.mrf.mxu0
    %926 = vmatprep.mubr.f32.mxu0 0.0
    %927 = vmatmul.mubr.f32.gmra.mxu0 %v818
    %v928 = vpop.f32.mrf.mxu0
    %v929 = vadd.f32 %v840, %v928
    %v930 = vpop.f32.mrf.mxu0
    %931 = vdwg.mxu0
    %932 = vst.msk [vmem:[#allocation4] sm:$0xff] %vm530, %v577
    %933 = vst.msk [vmem:[#allocation4 + $0x8] sm:$0xff] %vm530, %v579
    %934 = vst.msk [vmem:[#allocation4 + $0x10] sm:$0xff] %vm530, %v581
    %935 = vst.msk [vmem:[#allocation4 + $0x18] sm:$0xff] %vm530, %v583
    %936 = vst.msk [vmem:[#allocation4 + $0x20] sm:$0xff] %vm530, %v585
    %v937 = vadd.f32 %v909, %v696
    %v938 = vadd.f32 %v914, %v697
    %v939 = vadd.f32 %v919, %v698
    %v940 = vadd.f32 %v924, %v699
    %v941 = vadd.f32 %v929, %v700
    %942 = vst [vmem:[%s13] sm:$0xff] %v937
    %943 = vst [vmem:[%s13 + $0x8] sm:$0xff] %v938
    %944 = vst [vmem:[%s13 + $0x10] sm:$0xff] %v939
    %945 = vst [vmem:[%s13 + $0x18] sm:$0xff] %v940
    %946 = vst [vmem:[%s13 + $0x20] sm:$0xff] %v941
    // Predicated region
    $region54: #{transformer_layer.1} parent=1 // pred_check
      _
    $region55: #{transformer_layer.1} parent=1 // pred_check_branch
      %948 = sbr.rel (0) target = $region57
    $region56: #{transformer_layer.1} parent=1 // pred_region
      %s950 = ssub.s32 640, 640
      %951 = vsyncadd [#allocation5], %s950
      %s952 = sshll.u32 [#allocation4], 4
      %s953 = int_to_ptr.vmem [resolvable:$true] %s952
      %958 = dma.vmem_to_hbm [thread:$0]  %s953, 640, %s12, [#allocation5], 128, 128, 8
    $region57: #{transformer_layer.1} parent=1 // pred_fallthru
      _
    // Predicated region
    $region58: #{transformer_layer.1} parent=1 // pred_check
      _
    $region59: #{transformer_layer.1} parent=1 // pred_check_branch
      %960 = sbr.rel (0) target = $region61
    $region60: #{transformer_layer.1} parent=1 // pred_region
      _
    $region61: #{transformer_layer.1} parent=1 // pred_fallthru
      _
    // Predicated region
    $region62: #{transformer_layer.1} parent=1 // pred_check
      _
    $region63: #{transformer_layer.1} parent=1 // pred_check_branch
      %962 = sbr.rel (0) target = $region65
    $region64: #{transformer_layer.1} parent=1 // pred_region
      %963 = dma.done [#allocation5], 640
    $region65: #{transformer_layer.1} parent=1 // pred_fallthru
      _
    // Predicated region
    $region66: #{transformer_layer.1} parent=1 // pred_check
      _
    $region67: #{transformer_layer.1} parent=1 // pred_check_branch
      %965 = sbr.rel (0) target = $region69
    $region68: #{transformer_layer.1} parent=1 // pred_region
      _
    $region69: #{transformer_layer.1} parent=1 // pred_fallthru
      _
    %966 = vsyncpa [#allocation5], 1

</llo_original>
